<compile_context>
chip_gen: v5e
topology: v5e:2x2
jax: 0.10.0
libtpu: 0.0.40
codegen_flags: <defaults>
</compile_context>

<pallas_src>
import numpy as np
import jax
import jax.numpy as jnp
from jax import lax
from jax.experimental import pallas as pl
from jax.experimental.pallas import tpu as pltpu

EPS = 1e-5


# --------------------------- host-built constant matrices --------------------

def _upsample_matrix(n):
    """(2n, n) matrix equal to F.interpolate(scale_factor=2, mode='bilinear',
    align_corners=False) along one axis."""
    U = np.zeros((2 * n, n), np.float32)
    for p in range(2 * n):
        src = max((p + 0.5) * 0.5 - 0.5, 0.0)
        i0 = min(int(np.floor(src)), n - 1)
        i1 = min(i0 + 1, n - 1)
        f = src - i0
        U[p, i0] += 1.0 - f
        U[p, i1] += f
    return U


def _dwt_matrix(n):
    """(2n, 2n) 1-D Haar analysis matrix (pywt 'haar', mode='zero', even length);
    rows [0:n] = lowpass, rows [n:2n] = highpass."""
    r = 1.0 / np.sqrt(2.0)
    D = np.zeros((2 * n, 2 * n), np.float32)
    for j in range(n):
        D[j, 2 * j] = r
        D[j, 2 * j + 1] = r
        D[n + j, 2 * j] = r
        D[n + j, 2 * j + 1] = -r
    return D


# --------------------------------- kernel ------------------------------------

def _skip_kernel(x1_ref, x2_ref,
                 wck_ref, bc1_ref, uhb_ref, uwt_ref,
                 ak_ref, bk_ref, bc2_ref,
                 dhb_ref, dwlo_ref, dwhi_ref,
                 llo_ref, lhi_ref, sh_ref,
                 o_ref):
    # Channel-stacked layout: x1 (d1*H1, W1), x2/out (d2*H2, W2).
    def mm(a, b):
        return jnp.dot(a, b, preferred_element_type=jnp.float32)

    x1 = x1_ref[0]
    x2 = x2_ref[0]

    # 1x1 conv on x1 (d1 -> d2): kron(Wc, I_H1) @ x1 + bias
    x1c = mm(wck_ref[...], x1) + bc1_ref[...]                  # (d2*H1, W1)

    # bilinear x2 upsample, all channels in one matmul pair
    x1u = mm(mm(uhb_ref[...], x1c), uwt_ref[...])              # (d2*H2, W2)

    # s = out1 + out2 = (I + Wc[:, :d2]) x1u + (I + Wc[:, d2:]) x2 + bc
    # (the two Haar DWTs of the module are fused by linearity: dwt(a)+dwt(b)=dwt(a+b))
    s = mm(ak_ref[...], x1u) + mm(bk_ref[...], x2) + bc2_ref[...]

    # Haar DWT over height (rows per channel block: [lo | hi])
    t = mm(dhb_ref[...], s)                                    # (d2*H2, W2)

    # final 1x1 conv over the 4 subbands (BN scale folded in) at LOW resolution:
    # width lo/hi split folded into dwlo/dwhi, quadrant row-extraction + channel
    # mixing folded into L_lo / L_hi.
    low = (mm(llo_ref[...], mm(t, dwlo_ref[...]))
           + mm(lhi_ref[...], mm(t, dwhi_ref[...]))
           + sh_ref[...])                                      # (d2*H1, W1)

    # bilinear upsample, ReLU, residual
    o_ref[0] = jnp.maximum(mm(mm(uhb_ref[...], low), uwt_ref[...]), 0.0) + x2


# ------------------------------ wrapper ---------------------------------------

def skip_forward(x1, x2, P):
    N, d1, H1, W1 = x1.shape
    Nb, d2, H2, W2 = x2.shape
    assert N == Nb and d1 == 2 * d2 and H2 == 2 * H1 and W2 == 2 * W1

    f32 = jnp.float32
    # ---- fold parameters ------------------------------------------------------
    wc = P["wc"].reshape(d2, d1).astype(f32)
    bc = P["bc"].astype(f32)
    wf = P["wf"].reshape(d2, 4 * d2).astype(f32)
    inv = 1.0 / jnp.sqrt(P["var"].astype(f32) + EPS)
    scale = P["gamma"].astype(f32) * inv
    shift = (P["bf"].astype(f32) - P["mean"].astype(f32)) * scale + P["beta"].astype(f32)
    wf_s = scale[:, None] * wf                        # BN scale folded into final conv

    eye_d2 = jnp.eye(d2, dtype=f32)
    eye_h1 = jnp.eye(H1, dtype=f32)
    eye_h2 = jnp.eye(H2, dtype=f32)

    # static spatial operators
    uh = jnp.asarray(_upsample_matrix(H1))            # (H2, H1)
    uwt = jnp.asarray(_upsample_matrix(W1).T)         # (W1, W2)
    dh = jnp.asarray(_dwt_matrix(H1))                 # (H2, H2)  rows [lo|hi]
    dw = jnp.asarray(_dwt_matrix(W1))                 # (W2, W2)  rows [lo|hi]

    # lifted to the channel-stacked (C*H, W) layout
    wck = jnp.kron(wc, eye_h1)                        # (d2*H1, d1*H1)
    uhb = jnp.kron(eye_d2, uh)                        # (d2*H2, d2*H1)
    ak = jnp.kron(eye_d2 + wc[:, :d2], eye_h2)        # (d2*H2, d2*H2) -> applies to x1_up
    bk = jnp.kron(eye_d2 + wc[:, d2:], eye_h2)        # (d2*H2, d2*H2) -> applies to x2
    dhb = jnp.kron(eye_d2, dh)                        # (d2*H2, d2*H2)
    dwlo = dw[:W1, :].T                               # (W2, W1) lowpass width cols
    dwhi = dw[W1:, :].T                               # (W2, W1) highpass width cols
    s_lo = jnp.eye(H2, dtype=f32)[:H1]                # (H1, H2) selects lo-h rows
    s_hi = jnp.eye(H2, dtype=f32)[H1:]                # (H1, H2) selects hi-h rows
    # module channel order: [yL(lo,lo), yH0(hi-h,lo-w), yH1(lo-h,hi-w), yH2(hi,hi)]
    llo = jnp.kron(wf_s[:, 0 * d2:1 * d2], s_lo) + jnp.kron(wf_s[:, 1 * d2:2 * d2], s_hi)
    lhi = jnp.kron(wf_s[:, 2 * d2:3 * d2], s_lo) + jnp.kron(wf_s[:, 3 * d2:4 * d2], s_hi)

    bc1 = jnp.repeat(bc, H1).reshape(d2 * H1, 1)
    bc2 = jnp.repeat(bc, H2).reshape(d2 * H2, 1)
    sh = jnp.repeat(shift, H1).reshape(d2 * H1, 1)

    # channel-stacked inputs (free contiguous reshapes, done outside the kernel)
    x1s = x1.astype(f32).reshape(N, d1 * H1, W1)
    x2s = x2.astype(f32).reshape(N, d2 * H2, W2)

    consts = [wck, bc1, uhb, uwt, ak, bk, bc2, dhb, dwlo, dwhi, llo, lhi, sh]

    def const_spec(a):
        return pl.BlockSpec(a.shape, lambda n: (0, 0))

    out = pl.pallas_call(
        _skip_kernel,
        out_shape=jax.ShapeDtypeStruct((N, d2 * H2, W2), f32),
        grid=(N,),
        in_specs=[pl.BlockSpec((1, d1 * H1, W1), lambda n: (n, 0, 0)),
                  pl.BlockSpec((1, d2 * H2, W2), lambda n: (n, 0, 0))]
                 + [const_spec(a) for a in consts],
        out_specs=pl.BlockSpec((1, d2 * H2, W2), lambda n: (n, 0, 0)),
        compiler_params=pltpu.CompilerParams(dimension_semantics=("parallel",)),
    )(x1s, x2s, *consts)
    return out.reshape(N, d2, H2, W2)


# ------------------------------ pure-JAX reference ----------------------------

def _ref_upsample2(x):
    """F.interpolate(scale_factor=2, mode='bilinear', align_corners=False)."""
    N, C, H, W = x.shape

    def idx(in_size):
        d = jnp.arange(2 * in_size, dtype=jnp.float32)
        src = jnp.maximum((d + 0.5) * 0.5 - 0.5, 0.0)
        i0 = jnp.clip(jnp.floor(src).astype(jnp.int32), 0, in_size - 1)
        i1 = jnp.minimum(i0 + 1, in_size - 1)
        f = src - i0.astype(jnp.float32)
        return i0, i1, f

    h0, h1, fh = idx(H)
    w0, w1, fw = idx(W)
    xh = x[:, :, h0, :] * (1 - fh)[None, None, :, None] + \
         x[:, :, h1, :] * fh[None, None, :, None]
    return xh[:, :, :, w0] * (1 - fw)[None, None, None, :] + \
           xh[:, :, :, w1] * fw[None, None, None, :]


def _ref_dwt_haar(x):
    """pytorch_wavelets DWTForward(J=1, wave='haar', mode='zero') on even sizes."""
    N, C, H, W = x.shape
    r = 1.0 / np.sqrt(2.0)
    filt = jnp.array([[r, r], [r, -r]], jnp.float32)      # reversed dec_lo/dec_hi
    dn = ("NCHW", "OIHW", "NCHW")
    f_row = jnp.tile(filt, (C, 1)).reshape(2 * C, 1, 1, 2)
    lohi = lax.conv_general_dilated(x, f_row, (1, 2), ((0, 0), (0, 0)),
                                    feature_group_count=C, dimension_numbers=dn)
    f_col = jnp.tile(filt, (2 * C, 1)).reshape(4 * C, 1, 2, 1)
    y = lax.conv_general_dilated(lohi, f_col, (2, 1), ((0, 0), (0, 0)),
                                 feature_group_count=2 * C, dimension_numbers=dn)
    y = y.reshape(N, C, 4, H // 2, W // 2)
    return y[:, :, 0], y[:, :, 1:]


def torch_like_ref(x1, x2, P):
    dn = ("NCHW", "OIHW", "NCHW")

    def conv1x1(x, w, b):
        y = lax.conv_general_dilated(x, w, (1, 1), ((0, 0), (0, 0)),
                                     dimension_numbers=dn)
        return y + b[None, :, None, None]

    x1c = conv1x1(x1, P["wc"], P["bc"])
    x1u = _ref_upsample2(x1c)
    out1 = x1u + x2
    yL1, yH1 = _ref_dwt_haar(out1)
    out2 = conv1x1(jnp.concatenate([x1u, x2], axis=1), P["wc"], P["bc"])
    yL2, yH2 = _ref_dwt_haar(out2)
    yL = yL1 + yL2
    yH = yH1 + yH2
    out = jnp.concatenate([yL, yH[:, :, 0], yH[:, :, 1], yH[:, :, 2]], axis=1)
    out = _ref_upsample2(out)
    out = conv1x1(out, P["wf"], P["bf"])
    out = (out - P["mean"][None, :, None, None]) / \
          jnp.sqrt(P["var"][None, :, None, None] + EPS)
    out = out * P["gamma"][None, :, None, None] + P["beta"][None, :, None, None]
    out = jnp.maximum(out, 0.0)
    return out + x2


# ------------------------------ parameters ------------------------------------

def init_params(key, dim1, dim2):
    ks = jax.random.split(key, 8)
    w = lambda k, s, sc=0.1: jax.random.normal(k, s, jnp.float32) * sc
    return dict(
        wc=w(ks[0], (dim2, dim1, 1, 1)), bc=w(ks[1], (dim2,)),
        wf=w(ks[2], (dim2, 4 * dim2, 1, 1)), bf=w(ks[3], (dim2,)),
        gamma=1.0 + 0.1 * jax.random.normal(ks[4], (dim2,), jnp.float32),
        beta=0.1 * jax.random.normal(ks[5], (dim2,), jnp.float32),
        mean=0.1 * jax.random.normal(ks[6], (dim2,), jnp.float32),
        var=0.5 + jax.random.uniform(ks[7], (dim2,), dtype=jnp.float32),
    )


if __name__ == "__main__":
    key = jax.random.PRNGKey(0)
    k1, k2, kp = jax.random.split(key, 3)
    N, dim2 = 2, 4
    dim1 = 2 * dim2            # required by the module: conv reused on cat([x1, x2])
    H1 = W1 = 16               # x2 (and the output) live at 2x this resolution
    x1 = jax.random.normal(k1, (N, dim1, H1, W1), jnp.float32)
    x2 = jax.random.normal(k2, (N, dim2, 2 * H1, 2 * W1), jnp.float32)
    P = init_params(kp, dim1, dim2)

    fwd = jax.jit(skip_forward)
    out = jax.block_until_ready(fwd(x1, x2, P))
    ref = jax.block_until_ready(torch_like_ref(x1, x2, P))

    assert out.shape == (N, dim2, 2 * H1, 2 * W1), out.shape
    np.testing.assert_allclose(np.asarray(out), np.asarray(ref), rtol=2e-3, atol=2e-3)
    print("KERNEL_OK")
</pallas_src>

<mosaic_0001>
module attributes {stable_mosaic.version = 11 : i64} {
  func.func @_skip_kernel(%arg0: i32, %arg1: memref<1x128x16xf32, #tpu.memory_space<vmem>>, %arg2: memref<1x128x32xf32, #tpu.memory_space<vmem>>, %arg3: memref<64x128xf32, #tpu.memory_space<vmem>>, %arg4: memref<64x1xf32, #tpu.memory_space<vmem>>, %arg5: memref<128x64xf32, #tpu.memory_space<vmem>>, %arg6: memref<16x32xf32, #tpu.memory_space<vmem>>, %arg7: memref<128x128xf32, #tpu.memory_space<vmem>>, %arg8: memref<128x128xf32, #tpu.memory_space<vmem>>, %arg9: memref<128x1xf32, #tpu.memory_space<vmem>>, %arg10: memref<128x128xf32, #tpu.memory_space<vmem>>, %arg11: memref<32x16xf32, #tpu.memory_space<vmem>>, %arg12: memref<32x16xf32, #tpu.memory_space<vmem>>, %arg13: memref<64x128xf32, #tpu.memory_space<vmem>>, %arg14: memref<64x128xf32, #tpu.memory_space<vmem>>, %arg15: memref<64x1xf32, #tpu.memory_space<vmem>>, %arg16: memref<1x128x32xf32, #tpu.memory_space<vmem>>) attributes {dimension_semantics = [#tpu.dimension_semantics<parallel>], iteration_bounds = array<i64: 2>, scalar_prefetch = 0 : i64, scratch_operands = 0 : i64, tpu.core_type = #tpu.core_type<tc>, window_params = [{transform_indices = @transform_0, window_bounds = array<i64: 1, 128, 16>}, {transform_indices = @transform_1, window_bounds = array<i64: 1, 128, 32>}, {pipeline_mode = #tpu.pipeline_mode<synchronous>, transform_indices = @transform_2, window_bounds = array<i64: 64, 128>}, {pipeline_mode = #tpu.pipeline_mode<synchronous>, transform_indices = @transform_3, window_bounds = array<i64: 64, 1>}, {pipeline_mode = #tpu.pipeline_mode<synchronous>, transform_indices = @transform_4, window_bounds = array<i64: 128, 64>}, {pipeline_mode = #tpu.pipeline_mode<synchronous>, transform_indices = @transform_5, window_bounds = array<i64: 16, 32>}, {pipeline_mode = #tpu.pipeline_mode<synchronous>, transform_indices = @transform_6, window_bounds = array<i64: 128, 128>}, {pipeline_mode = #tpu.pipeline_mode<synchronous>, transform_indices = @transform_7, window_bounds = array<i64: 128, 128>}, {pipeline_mode = #tpu.pipeline_mode<synchronous>, transform_indices = @transform_8, window_bounds = array<i64: 128, 1>}, {pipeline_mode = #tpu.pipeline_mode<synchronous>, transform_indices = @transform_9, window_bounds = array<i64: 128, 128>}, {pipeline_mode = #tpu.pipeline_mode<synchronous>, transform_indices = @transform_10, window_bounds = array<i64: 32, 16>}, {pipeline_mode = #tpu.pipeline_mode<synchronous>, transform_indices = @transform_11, window_bounds = array<i64: 32, 16>}, {pipeline_mode = #tpu.pipeline_mode<synchronous>, transform_indices = @transform_12, window_bounds = array<i64: 64, 128>}, {pipeline_mode = #tpu.pipeline_mode<synchronous>, transform_indices = @transform_13, window_bounds = array<i64: 64, 128>}, {pipeline_mode = #tpu.pipeline_mode<synchronous>, transform_indices = @transform_14, window_bounds = array<i64: 64, 1>}, {transform_indices = @transform_15, window_bounds = array<i64: 1, 128, 32>}]} {
    %c0 = arith.constant 0 : index
    %c0_0 = arith.constant 0 : index
    %c0_1 = arith.constant 0 : index
    %0 = vector.load %arg1[%c0, %c0_0, %c0_1] : memref<1x128x16xf32, #tpu.memory_space<vmem>>, vector<1x128x16xf32>
    %1 = vector.shape_cast %0 : vector<1x128x16xf32> to vector<128x16xf32>
    %c0_2 = arith.constant 0 : index
    %c0_3 = arith.constant 0 : index
    %c0_4 = arith.constant 0 : index
    %2 = vector.load %arg2[%c0_2, %c0_3, %c0_4] : memref<1x128x32xf32, #tpu.memory_space<vmem>>, vector<1x128x32xf32>
    %3 = vector.shape_cast %2 : vector<1x128x32xf32> to vector<128x32xf32>
    %c0_5 = arith.constant 0 : index
    %c0_6 = arith.constant 0 : index
    %4 = vector.load %arg3[%c0_5, %c0_6] : memref<64x128xf32, #tpu.memory_space<vmem>>, vector<64x128xf32>
    %cst = arith.constant dense<0.000000e+00> : vector<64x16xf32>
    %5 = tpu.matmul %4, %1, %cst {dimension_numbers = #tpu.dot_dimension_numbers<[1], [0], [0], [1], [0, 0, 1, 1], [], []>} : vector<64x128xf32>, vector<128x16xf32>, vector<64x16xf32> -> vector<64x16xf32>
    %c0_7 = arith.constant 0 : index
    %c0_8 = arith.constant 0 : index
    %6 = vector.load %arg4[%c0_7, %c0_8] : memref<64x1xf32, #tpu.memory_space<vmem>>, vector<64x1xf32>
    %7 = vector.broadcast %6 : vector<64x1xf32> to vector<64x16xf32>
    %8 = arith.addf %5, %7 : vector<64x16xf32>
    %c0_9 = arith.constant 0 : index
    %c0_10 = arith.constant 0 : index
    %9 = vector.load %arg5[%c0_9, %c0_10] : memref<128x64xf32, #tpu.memory_space<vmem>>, vector<128x64xf32>
    %cst_11 = arith.constant dense<0.000000e+00> : vector<128x16xf32>
    %10 = tpu.matmul %9, %8, %cst_11 {dimension_numbers = #tpu.dot_dimension_numbers<[1], [0], [0], [1], [0, 0, 1, 1], [], []>} : vector<128x64xf32>, vector<64x16xf32>, vector<128x16xf32> -> vector<128x16xf32>
    %c0_12 = arith.constant 0 : index
    %c0_13 = arith.constant 0 : index
    %11 = vector.load %arg6[%c0_12, %c0_13] : memref<16x32xf32, #tpu.memory_space<vmem>>, vector<16x32xf32>
    %cst_14 = arith.constant dense<0.000000e+00> : vector<128x32xf32>
    %12 = tpu.matmul %10, %11, %cst_14 {dimension_numbers = #tpu.dot_dimension_numbers<[1], [0], [0], [1], [0, 0, 1, 1], [], []>} : vector<128x16xf32>, vector<16x32xf32>, vector<128x32xf32> -> vector<128x32xf32>
    %c0_15 = arith.constant 0 : index
    %c0_16 = arith.constant 0 : index
    %13 = vector.load %arg7[%c0_15, %c0_16] : memref<128x128xf32, #tpu.memory_space<vmem>>, vector<128x128xf32>
    %cst_17 = arith.constant dense<0.000000e+00> : vector<128x32xf32>
    %14 = tpu.matmul %13, %12, %cst_17 {dimension_numbers = #tpu.dot_dimension_numbers<[1], [0], [0], [1], [0, 0, 1, 1], [], []>} : vector<128x128xf32>, vector<128x32xf32>, vector<128x32xf32> -> vector<128x32xf32>
    %c0_18 = arith.constant 0 : index
    %c0_19 = arith.constant 0 : index
    %15 = vector.load %arg8[%c0_18, %c0_19] : memref<128x128xf32, #tpu.memory_space<vmem>>, vector<128x128xf32>
    %cst_20 = arith.constant dense<0.000000e+00> : vector<128x32xf32>
    %16 = tpu.matmul %15, %3, %cst_20 {dimension_numbers = #tpu.dot_dimension_numbers<[1], [0], [0], [1], [0, 0, 1, 1], [], []>} : vector<128x128xf32>, vector<128x32xf32>, vector<128x32xf32> -> vector<128x32xf32>
    %17 = arith.addf %14, %16 : vector<128x32xf32>
    %c0_21 = arith.constant 0 : index
    %c0_22 = arith.constant 0 : index
    %18 = vector.load %arg9[%c0_21, %c0_22] : memref<128x1xf32, #tpu.memory_space<vmem>>, vector<128x1xf32>
    %19 = vector.broadcast %18 : vector<128x1xf32> to vector<128x32xf32>
    %20 = arith.addf %17, %19 : vector<128x32xf32>
    %c0_23 = arith.constant 0 : index
    %c0_24 = arith.constant 0 : index
    %21 = vector.load %arg10[%c0_23, %c0_24] : memref<128x128xf32, #tpu.memory_space<vmem>>, vector<128x128xf32>
    %cst_25 = arith.constant dense<0.000000e+00> : vector<128x32xf32>
    %22 = tpu.matmul %21, %20, %cst_25 {dimension_numbers = #tpu.dot_dimension_numbers<[1], [0], [0], [1], [0, 0, 1, 1], [], []>} : vector<128x128xf32>, vector<128x32xf32>, vector<128x32xf32> -> vector<128x32xf32>
    %c0_26 = arith.constant 0 : index
    %c0_27 = arith.constant 0 : index
    %23 = vector.load %arg13[%c0_26, %c0_27] : memref<64x128xf32, #tpu.memory_space<vmem>>, vector<64x128xf32>
    %c0_28 = arith.constant 0 : index
    %c0_29 = arith.constant 0 : index
    %24 = vector.load %arg11[%c0_28, %c0_29] : memref<32x16xf32, #tpu.memory_space<vmem>>, vector<32x16xf32>
    %cst_30 = arith.constant dense<0.000000e+00> : vector<128x16xf32>
    %25 = tpu.matmul %22, %24, %cst_30 {dimension_numbers = #tpu.dot_dimension_numbers<[1], [0], [0], [1], [0, 0, 1, 1], [], []>} : vector<128x32xf32>, vector<32x16xf32>, vector<128x16xf32> -> vector<128x16xf32>
    %cst_31 = arith.constant dense<0.000000e+00> : vector<64x16xf32>
    %26 = tpu.matmul %23, %25, %cst_31 {dimension_numbers = #tpu.dot_dimension_numbers<[1], [0], [0], [1], [0, 0, 1, 1], [], []>} : vector<64x128xf32>, vector<128x16xf32>, vector<64x16xf32> -> vector<64x16xf32>
    %c0_32 = arith.constant 0 : index
    %c0_33 = arith.constant 0 : index
    %27 = vector.load %arg14[%c0_32, %c0_33] : memref<64x128xf32, #tpu.memory_space<vmem>>, vector<64x128xf32>
    %c0_34 = arith.constant 0 : index
    %c0_35 = arith.constant 0 : index
    %28 = vector.load %arg12[%c0_34, %c0_35] : memref<32x16xf32, #tpu.memory_space<vmem>>, vector<32x16xf32>
    %cst_36 = arith.constant dense<0.000000e+00> : vector<128x16xf32>
    %29 = tpu.matmul %22, %28, %cst_36 {dimension_numbers = #tpu.dot_dimension_numbers<[1], [0], [0], [1], [0, 0, 1, 1], [], []>} : vector<128x32xf32>, vector<32x16xf32>, vector<128x16xf32> -> vector<128x16xf32>
    %cst_37 = arith.constant dense<0.000000e+00> : vector<64x16xf32>
    %30 = tpu.matmul %27, %29, %cst_37 {dimension_numbers = #tpu.dot_dimension_numbers<[1], [0], [0], [1], [0, 0, 1, 1], [], []>} : vector<64x128xf32>, vector<128x16xf32>, vector<64x16xf32> -> vector<64x16xf32>
    %31 = arith.addf %26, %30 : vector<64x16xf32>
    %c0_38 = arith.constant 0 : index
    %c0_39 = arith.constant 0 : index
    %32 = vector.load %arg15[%c0_38, %c0_39] : memref<64x1xf32, #tpu.memory_space<vmem>>, vector<64x1xf32>
    %33 = vector.broadcast %32 : vector<64x1xf32> to vector<64x16xf32>
    %34 = arith.addf %31, %33 : vector<64x16xf32>
    %c0_40 = arith.constant 0 : index
    %c0_41 = arith.constant 0 : index
    %35 = vector.load %arg5[%c0_40, %c0_41] : memref<128x64xf32, #tpu.memory_space<vmem>>, vector<128x64xf32>
    %cst_42 = arith.constant dense<0.000000e+00> : vector<128x16xf32>
    %36 = tpu.matmul %35, %34, %cst_42 {dimension_numbers = #tpu.dot_dimension_numbers<[1], [0], [0], [1], [0, 0, 1, 1], [], []>} : vector<128x64xf32>, vector<64x16xf32>, vector<128x16xf32> -> vector<128x16xf32>
    %c0_43 = arith.constant 0 : index
    %c0_44 = arith.constant 0 : index
    %37 = vector.load %arg6[%c0_43, %c0_44] : memref<16x32xf32, #tpu.memory_space<vmem>>, vector<16x32xf32>
    %cst_45 = arith.constant dense<0.000000e+00> : vector<128x32xf32>
    %38 = tpu.matmul %36, %37, %cst_45 {dimension_numbers = #tpu.dot_dimension_numbers<[1], [0], [0], [1], [0, 0, 1, 1], [], []>} : vector<128x16xf32>, vector<16x32xf32>, vector<128x32xf32> -> vector<128x32xf32>
    %cst_46 = arith.constant 0.000000e+00 : f32
    %39 = vector.broadcast %cst_46 : f32 to vector<128x32xf32>
    %40 = arith.maximumf %38, %39 : vector<128x32xf32>
    %41 = arith.addf %40, %3 : vector<128x32xf32>
    %c0_47 = arith.constant 0 : index
    %c0_48 = arith.constant 0 : index
    %c0_49 = arith.constant 0 : index
    %42 = vector.load %arg16[%c0_47, %c0_48, %c0_49] : memref<1x128x32xf32, #tpu.memory_space<vmem>>, vector<1x128x32xf32>
    %43 = vector.shape_cast %42 : vector<1x128x32xf32> to vector<128x32xf32>
    %44 = vector.shape_cast %41 : vector<128x32xf32> to vector<1x128x32xf32>
    tpu.vector_store %arg16[%c0_47, %c0_48, %c0_49], %44 {strides = array<i32>} : memref<1x128x32xf32, #tpu.memory_space<vmem>>, vector<1x128x32xf32>,
    return
  }
  func.func @transform_0(%arg0: i32) -> (i32, i32, i32) {
    %c0_i32 = arith.constant 0 : i32
    %c0_i32_0 = arith.constant 0 : i32
    %c0_i32_1 = arith.constant 0 : i32
    return %arg0, %c0_i32, %c0_i32_0 : i32, i32, i32
  }
  func.func @transform_1(%arg0: i32) -> (i32, i32, i32) {
    %c0_i32 = arith.constant 0 : i32
    %c0_i32_0 = arith.constant 0 : i32
    %c0_i32_1 = arith.constant 0 : i32
    return %arg0, %c0_i32, %c0_i32_0 : i32, i32, i32
  }
  func.func @transform_2(%arg0: i32) -> (i32, i32) {
    %c0_i32 = arith.constant 0 : i32
    %c0_i32_0 = arith.constant 0 : i32
    %c0_i32_1 = arith.constant 0 : i32
    return %c0_i32, %c0_i32_0 : i32, i32
  }
  func.func @transform_3(%arg0: i32) -> (i32, i32) {
    %c0_i32 = arith.constant 0 : i32
    %c0_i32_0 = arith.constant 0 : i32
    %c0_i32_1 = arith.constant 0 : i32
    return %c0_i32, %c0_i32_0 : i32, i32
  }
  func.func @transform_4(%arg0: i32) -> (i32, i32) {
    %c0_i32 = arith.constant 0 : i32
    %c0_i32_0 = arith.constant 0 : i32
    %c0_i32_1 = arith.constant 0 : i32
    return %c0_i32, %c0_i32_0 : i32, i32
  }
  func.func @transform_5(%arg0: i32) -> (i32, i32) {
    %c0_i32 = arith.constant 0 : i32
    %c0_i32_0 = arith.constant 0 : i32
    %c0_i32_1 = arith.constant 0 : i32
    return %c0_i32, %c0_i32_0 : i32, i32
  }
  func.func @transform_6(%arg0: i32) -> (i32, i32) {
    %c0_i32 = arith.constant 0 : i32
    %c0_i32_0 = arith.constant 0 : i32
    %c0_i32_1 = arith.constant 0 : i32
    return %c0_i32, %c0_i32_0 : i32, i32
  }
  func.func @transform_7(%arg0: i32) -> (i32, i32) {
    %c0_i32 = arith.constant 0 : i32
    %c0_i32_0 = arith.constant 0 : i32
    %c0_i32_1 = arith.constant 0 : i32
    return %c0_i32, %c0_i32_0 : i32, i32
  }
  func.func @transform_8(%arg0: i32) -> (i32, i32) {
    %c0_i32 = arith.constant 0 : i32
    %c0_i32_0 = arith.constant 0 : i32
    %c0_i32_1 = arith.constant 0 : i32
    return %c0_i32, %c0_i32_0 : i32, i32
  }
  func.func @transform_9(%arg0: i32) -> (i32, i32) {
    %c0_i32 = arith.constant 0 : i32
    %c0_i32_0 = arith.constant 0 : i32
    %c0_i32_1 = arith.constant 0 : i32
    return %c0_i32, %c0_i32_0 : i32, i32
  }
  func.func @transform_10(%arg0: i32) -> (i32, i32) {
    %c0_i32 = arith.constant 0 : i32
    %c0_i32_0 = arith.constant 0 : i32
    %c0_i32_1 = arith.constant 0 : i32
    return %c0_i32, %c0_i32_0 : i32, i32
  }
  func.func @transform_11(%arg0: i32) -> (i32, i32) {
    %c0_i32 = arith.constant 0 : i32
    %c0_i32_0 = arith.constant 0 : i32
    %c0_i32_1 = arith.constant 0 : i32
    return %c0_i32, %c0_i32_0 : i32, i32
  }
  func.func @transform_12(%arg0: i32) -> (i32, i32) {
    %c0_i32 = arith.constant 0 : i32
    %c0_i32_0 = arith.constant 0 : i32
    %c0_i32_1 = arith.constant 0 : i32
    return %c0_i32, %c0_i32_0 : i32, i32
  }
  func.func @transform_13(%arg0: i32) -> (i32, i32) {
    %c0_i32 = arith.constant 0 : i32
    %c0_i32_0 = arith.constant 0 : i32
    %c0_i32_1 = arith.constant 0 : i32
    return %c0_i32, %c0_i32_0 : i32, i32
  }
  func.func @transform_14(%arg0: i32) -> (i32, i32) {
    %c0_i32 = arith.constant 0 : i32
    %c0_i32_0 = arith.constant 0 : i32
    %c0_i32_1 = arith.constant 0 : i32
    return %c0_i32, %c0_i32_0 : i32, i32
  }
  func.func @transform_15(%arg0: i32) -> (i32, i32, i32) {
    %c0_i32 = arith.constant 0 : i32
    %c0_i32_0 = arith.constant 0 : i32
    %c0_i32_1 = arith.constant 0 : i32
    return %arg0, %c0_i32, %c0_i32_0 : i32, i32, i32
  }
}

</mosaic_0001>

<llo_original>
// kernel: skip_forward.1
$region0: #{skip_forward.1}
  #allocation0 [shape = 'u32[]', space=smem, size = 0x4, offset = 0x4, fixed_abs, tag = 'smem constant byte address 0x4 - core index']
  #allocation1 [shape = 'u32[72,128]{1,0:T(1,128)}', space=vmem, size = 0x9000, scoped, tag = 'internal scratch']
  %s0 = inlined_call_operand.vmem [shape: f32[2,128,16], index: 0, kind: input, shape index: {}]
  %s1 = inlined_call_operand.vmem [shape: f32[2,128,32], index: 1, kind: input, shape index: {}]
  %s2 = inlined_call_operand.vmem [shape: f32[64,128], index: 2, kind: input, shape index: {}]
  %s3 = inlined_call_operand.vmem [shape: f32[64,1], index: 3, kind: input, shape index: {}]
  %s4 = inlined_call_operand.vmem [shape: f32[128,64], index: 4, kind: input, shape index: {}]
  %s5 = inlined_call_operand.vmem [shape: f32[16,32], index: 5, kind: input, shape index: {}]
  %s6 = inlined_call_operand.vmem [shape: f32[128,128], index: 6, kind: input, shape index: {}]
  %s7 = inlined_call_operand.vmem [shape: f32[128,128], index: 7, kind: input, shape index: {}]
  %s8 = inlined_call_operand.vmem [shape: f32[128,1], index: 8, kind: input, shape index: {}]
  %s9 = inlined_call_operand.vmem [shape: f32[128,128], index: 9, kind: input, shape index: {}]
  %s10 = inlined_call_operand.vmem [shape: f32[32,16], index: 10, kind: input, shape index: {}]
  %s11 = inlined_call_operand.vmem [shape: f32[32,16], index: 11, kind: input, shape index: {}]
  %s12 = inlined_call_operand.vmem [shape: f32[64,128], index: 12, kind: input, shape index: {}]
  %s13 = inlined_call_operand.vmem [shape: f32[64,128], index: 13, kind: input, shape index: {}]
  %s14 = inlined_call_operand.vmem [shape: f32[64,1], index: 14, kind: input, shape index: {}]
  %s15 = inlined_call_operand.hbm [shape: f32[2,128,32], index: 15, kind: output, shape index: {}]
  %s16 = sld [smem:[#allocation0]]
  $region93: #{skip_forward.1} parent=0
    _
  %s18 = ssub.s32 1, %s16
  %s19 = scalar_select 0, %s18, %s16
  $region1: #{skip_forward.1} parent=0
    #allocation2 [shape = 'u8[131072]{0}', space=vmem, size = 0x20000, scoped, tag = 'output window, operand 0']
    #allocation3 [shape = 's32[2]{0}', space=sflag, size = 0x8, scoped, tag = 'scoped memory for skip_forward.1']
    %20 = vsyncpa [#allocation3], 0
    %s21 = scalar_lea.sflag [#allocation3], 1
    %22 = vsyncpa %s21, 0
    loop: start=0, step=1, limit=4
    $region2: #{skip_forward.1} parent=1 // loop_pre_header
      _
    $region3: #{skip_forward.1} parent=1 // loop_header
      %s24 = sphi 0, %s28
      %p25 = scmp.ge.s32.totalorder %s24, 4
      %s34 = sphi 0, %s36
      %s37 = sphi 0, %s34
      %s38 = sphi 0, %s37
      %s54 = sphi 0, %s38
      %s60 = sphi 0, %s62
      %s63 = sphi 0, %s60
      %s64 = sphi 0, %s63
      %s80 = sphi 0, %s64
      %s84 = sphi 0, %s84
      %s86 = sphi 0, %s84
      %s87 = sphi 0, %s86
      %s101 = sphi 0, %s87
      %s105 = sphi 0, %s105
      %s107 = sphi 0, %s105
      %s108 = sphi 0, %s107
      %s122 = sphi 0, %s108
      %s126 = sphi 0, %s126
      %s128 = sphi 0, %s126
      %s129 = sphi 0, %s128
      %s143 = sphi 0, %s129
      %s147 = sphi 0, %s147
      %s149 = sphi 0, %s147
      %s150 = sphi 0, %s149
      %s164 = sphi 0, %s150
      %s168 = sphi 0, %s168
      %s170 = sphi 0, %s168
      %s171 = sphi 0, %s170
      %s185 = sphi 0, %s171
      %s189 = sphi 0, %s189
      %s191 = sphi 0, %s189
      %s192 = sphi 0, %s191
      %s206 = sphi 0, %s192
      %s210 = sphi 0, %s210
      %s212 = sphi 0, %s210
      %s213 = sphi 0, %s212
      %s227 = sphi 0, %s213
      %s231 = sphi 0, %s231
      %s233 = sphi 0, %s231
      %s234 = sphi 0, %s233
      %s248 = sphi 0, %s234
      %s252 = sphi 0, %s252
      %s254 = sphi 0, %s252
      %s255 = sphi 0, %s254
      %s269 = sphi 0, %s255
      %s273 = sphi 0, %s273
      %s275 = sphi 0, %s273
      %s276 = sphi 0, %s275
      %s290 = sphi 0, %s276
      %s294 = sphi 0, %s294
      %s296 = sphi 0, %s294
      %s297 = sphi 0, %s296
      %s311 = sphi 0, %s297
      %s315 = sphi 0, %s315
      %s317 = sphi 0, %s315
      %s318 = sphi 0, %s317
      %s332 = sphi 0, %s318
      %s336 = sphi 0, %s336
      %s338 = sphi 0, %s336
      %s339 = sphi 0, %s338
      %s353 = sphi 0, %s339
      %s359 = sphi 0, %s361
      %s362 = sphi 0, %s359
      %s363 = sphi 0, %s362
      %s379 = sphi 0, %s363
    $region4: #{skip_forward.1} parent=1 // loop_header_branch
      %27 = sbr.rel (%p25) target = $region8
    $region5: #{skip_forward.1} parent=1 // loop_body
      %s29 = ssub.s32 %s24, 1
      %s30 = ssub.s32 %s24, 2
      %s31 = sadd.s32 %s24, 1
      %s32 = ssub.s32 %s24, %s31
      %p33 = scmp.eq.s32.totalorder %s32, 0
      %s35 = sadd.s32 %s34, 1
      %s36 = scalar_select %p33, %s34, %s35
      %p39 = pneg %p33
      %p40 = scmp.eq.s32.totalorder %s24, 1
      %p41 = por %p39, %p40
      %p42 = scmp.ne.s32.totalorder %s34, %s37
      %p43 = scmp.eq.s32.totalorder %s24, 0
      %p44 = por %p42, %p43
      %p45 = scmp.ne.s32.totalorder %s34, %s37
      %p46 = scmp.eq.s32.totalorder %s29, 1
      %p47 = por %p45, %p46
      %p48 = scmp.ne.s32.totalorder %s37, %s38
      %p49 = scmp.eq.s32.totalorder %s29, 0
      %p50 = por %p48, %p49
      %p51 = scmp.ne.s32.totalorder %s37, %s38
      %p52 = scmp.eq.s32.totalorder %s30, 1
      %p53 = por %p51, %p52
      %p55 = scmp.ne.s32.totalorder %s38, %s54
      %p56 = scmp.eq.s32.totalorder %s30, 0
      %p57 = por %p55, %p56
      %s58 = ssub.s32 %s24, %s31
      %p59 = scmp.eq.s32.totalorder %s58, 0
      %s61 = sadd.s32 %s60, 1
      %s62 = scalar_select %p59, %s60, %s61
      %p65 = pneg %p59
      %p66 = scmp.eq.s32.totalorder %s24, 1
      %p67 = por %p65, %p66
      %p68 = scmp.ne.s32.totalorder %s60, %s63
      %p69 = scmp.eq.s32.totalorder %s24, 0
      %p70 = por %p68, %p69
      %p71 = scmp.ne.s32.totalorder %s60, %s63
      %p72 = scmp.eq.s32.totalorder %s29, 1
      %p73 = por %p71, %p72
      %p74 = scmp.ne.s32.totalorder %s63, %s64
      %p75 = scmp.eq.s32.totalorder %s29, 0
      %p76 = por %p74, %p75
      %p77 = scmp.ne.s32.totalorder %s63, %s64
      %p78 = scmp.eq.s32.totalorder %s30, 1
      %p79 = por %p77, %p78
      %p81 = scmp.ne.s32.totalorder %s64, %s80
      %p82 = scmp.eq.s32.totalorder %s30, 0
      %p83 = por %p81, %p82
      %s85 = sadd.s32 %s84, 1
      %p88 = scmp.eq.s32.totalorder %s24, 1
      %p89 = scmp.ne.s32.totalorder %s84, %s86
      %p90 = scmp.eq.s32.totalorder %s24, 0
      %p91 = por %p89, %p90
      %p92 = scmp.ne.s32.totalorder %s84, %s86
      %p93 = scmp.eq.s32.totalorder %s29, 1
      %p94 = por %p92, %p93
      %p95 = scmp.ne.s32.totalorder %s86, %s87
      %p96 = scmp.eq.s32.totalorder %s29, 0
      %p97 = por %p95, %p96
      %p98 = scmp.ne.s32.totalorder %s86, %s87
      %p99 = scmp.eq.s32.totalorder %s30, 1
      %p100 = por %p98, %p99
      %p102 = scmp.ne.s32.totalorder %s87, %s101
      %p103 = scmp.eq.s32.totalorder %s30, 0
      %p104 = por %p102, %p103
      %s106 = sadd.s32 %s105, 1
      %p109 = scmp.eq.s32.totalorder %s24, 1
      %p110 = scmp.ne.s32.totalorder %s105, %s107
      %p111 = scmp.eq.s32.totalorder %s24, 0
      %p112 = por %p110, %p111
      %p113 = scmp.ne.s32.totalorder %s105, %s107
      %p114 = scmp.eq.s32.totalorder %s29, 1
      %p115 = por %p113, %p114
      %p116 = scmp.ne.s32.totalorder %s107, %s108
      %p117 = scmp.eq.s32.totalorder %s29, 0
      %p118 = por %p116, %p117
      %p119 = scmp.ne.s32.totalorder %s107, %s108
      %p120 = scmp.eq.s32.totalorder %s30, 1
      %p121 = por %p119, %p120
      %p123 = scmp.ne.s32.totalorder %s108, %s122
      %p124 = scmp.eq.s32.totalorder %s30, 0
      %p125 = por %p123, %p124
      %s127 = sadd.s32 %s126, 1
      %p130 = scmp.eq.s32.totalorder %s24, 1
      %p131 = scmp.ne.s32.totalorder %s126, %s128
      %p132 = scmp.eq.s32.totalorder %s24, 0
      %p133 = por %p131, %p132
      %p134 = scmp.ne.s32.totalorder %s126, %s128
      %p135 = scmp.eq.s32.totalorder %s29, 1
      %p136 = por %p134, %p135
      %p137 = scmp.ne.s32.totalorder %s128, %s129
      %p138 = scmp.eq.s32.totalorder %s29, 0
      %p139 = por %p137, %p138
      %p140 = scmp.ne.s32.totalorder %s128, %s129
      %p141 = scmp.eq.s32.totalorder %s30, 1
      %p142 = por %p140, %p141
      %p144 = scmp.ne.s32.totalorder %s129, %s143
      %p145 = scmp.eq.s32.totalorder %s30, 0
      %p146 = por %p144, %p145
      %s148 = sadd.s32 %s147, 1
      %p151 = scmp.eq.s32.totalorder %s24, 1
      %p152 = scmp.ne.s32.totalorder %s147, %s149
      %p153 = scmp.eq.s32.totalorder %s24, 0
      %p154 = por %p152, %p153
      %p155 = scmp.ne.s32.totalorder %s147, %s149
      %p156 = scmp.eq.s32.totalorder %s29, 1
      %p157 = por %p155, %p156
      %p158 = scmp.ne.s32.totalorder %s149, %s150
      %p159 = scmp.eq.s32.totalorder %s29, 0
      %p160 = por %p158, %p159
      %p161 = scmp.ne.s32.totalorder %s149, %s150
      %p162 = scmp.eq.s32.totalorder %s30, 1
      %p163 = por %p161, %p162
      %p165 = scmp.ne.s32.totalorder %s150, %s164
      %p166 = scmp.eq.s32.totalorder %s30, 0
      %p167 = por %p165, %p166
      %s169 = sadd.s32 %s168, 1
      %p172 = scmp.eq.s32.totalorder %s24, 1
      %p173 = scmp.ne.s32.totalorder %s168, %s170
      %p174 = scmp.eq.s32.totalorder %s24, 0
      %p175 = por %p173, %p174
      %p176 = scmp.ne.s32.totalorder %s168, %s170
      %p177 = scmp.eq.s32.totalorder %s29, 1
      %p178 = por %p176, %p177
      %p179 = scmp.ne.s32.totalorder %s170, %s171
      %p180 = scmp.eq.s32.totalorder %s29, 0
      %p181 = por %p179, %p180
      %p182 = scmp.ne.s32.totalorder %s170, %s171
      %p183 = scmp.eq.s32.totalorder %s30, 1
      %p184 = por %p182, %p183
      %p186 = scmp.ne.s32.totalorder %s171, %s185
      %p187 = scmp.eq.s32.totalorder %s30, 0
      %p188 = por %p186, %p187
      %s190 = sadd.s32 %s189, 1
      %p193 = scmp.eq.s32.totalorder %s24, 1
      %p194 = scmp.ne.s32.totalorder %s189, %s191
      %p195 = scmp.eq.s32.totalorder %s24, 0
      %p196 = por %p194, %p195
      %p197 = scmp.ne.s32.totalorder %s189, %s191
      %p198 = scmp.eq.s32.totalorder %s29, 1
      %p199 = por %p197, %p198
      %p200 = scmp.ne.s32.totalorder %s191, %s192
      %p201 = scmp.eq.s32.totalorder %s29, 0
      %p202 = por %p200, %p201
      %p203 = scmp.ne.s32.totalorder %s191, %s192
      %p204 = scmp.eq.s32.totalorder %s30, 1
      %p205 = por %p203, %p204
      %p207 = scmp.ne.s32.totalorder %s192, %s206
      %p208 = scmp.eq.s32.totalorder %s30, 0
      %p209 = por %p207, %p208
      %s211 = sadd.s32 %s210, 1
      %p214 = scmp.eq.s32.totalorder %s24, 1
      %p215 = scmp.ne.s32.totalorder %s210, %s212
      %p216 = scmp.eq.s32.totalorder %s24, 0
      %p217 = por %p215, %p216
      %p218 = scmp.ne.s32.totalorder %s210, %s212
      %p219 = scmp.eq.s32.totalorder %s29, 1
      %p220 = por %p218, %p219
      %p221 = scmp.ne.s32.totalorder %s212, %s213
      %p222 = scmp.eq.s32.totalorder %s29, 0
      %p223 = por %p221, %p222
      %p224 = scmp.ne.s32.totalorder %s212, %s213
      %p225 = scmp.eq.s32.totalorder %s30, 1
      %p226 = por %p224, %p225
      %p228 = scmp.ne.s32.totalorder %s213, %s227
      %p229 = scmp.eq.s32.totalorder %s30, 0
      %p230 = por %p228, %p229
      %s232 = sadd.s32 %s231, 1
      %p235 = scmp.eq.s32.totalorder %s24, 1
      %p236 = scmp.ne.s32.totalorder %s231, %s233
      %p237 = scmp.eq.s32.totalorder %s24, 0
      %p238 = por %p236, %p237
      %p239 = scmp.ne.s32.totalorder %s231, %s233
      %p240 = scmp.eq.s32.totalorder %s29, 1
      %p241 = por %p239, %p240
      %p242 = scmp.ne.s32.totalorder %s233, %s234
      %p243 = scmp.eq.s32.totalorder %s29, 0
      %p244 = por %p242, %p243
      %p245 = scmp.ne.s32.totalorder %s233, %s234
      %p246 = scmp.eq.s32.totalorder %s30, 1
      %p247 = por %p245, %p246
      %p249 = scmp.ne.s32.totalorder %s234, %s248
      %p250 = scmp.eq.s32.totalorder %s30, 0
      %p251 = por %p249, %p250
      %s253 = sadd.s32 %s252, 1
      %p256 = scmp.eq.s32.totalorder %s24, 1
      %p257 = scmp.ne.s32.totalorder %s252, %s254
      %p258 = scmp.eq.s32.totalorder %s24, 0
      %p259 = por %p257, %p258
      %p260 = scmp.ne.s32.totalorder %s252, %s254
      %p261 = scmp.eq.s32.totalorder %s29, 1
      %p262 = por %p260, %p261
      %p263 = scmp.ne.s32.totalorder %s254, %s255
      %p264 = scmp.eq.s32.totalorder %s29, 0
      %p265 = por %p263, %p264
      %p266 = scmp.ne.s32.totalorder %s254, %s255
      %p267 = scmp.eq.s32.totalorder %s30, 1
      %p268 = por %p266, %p267
      %p270 = scmp.ne.s32.totalorder %s255, %s269
      %p271 = scmp.eq.s32.totalorder %s30, 0
      %p272 = por %p270, %p271
      %s274 = sadd.s32 %s273, 1
      %p277 = scmp.eq.s32.totalorder %s24, 1
      %p278 = scmp.ne.s32.totalorder %s273, %s275
      %p279 = scmp.eq.s32.totalorder %s24, 0
      %p280 = por %p278, %p279
      %p281 = scmp.ne.s32.totalorder %s273, %s275
      %p282 = scmp.eq.s32.totalorder %s29, 1
      %p283 = por %p281, %p282
      %p284 = scmp.ne.s32.totalorder %s275, %s276
      %p285 = scmp.eq.s32.totalorder %s29, 0
      %p286 = por %p284, %p285
      %p287 = scmp.ne.s32.totalorder %s275, %s276
      %p288 = scmp.eq.s32.totalorder %s30, 1
      %p289 = por %p287, %p288
      %p291 = scmp.ne.s32.totalorder %s276, %s290
      %p292 = scmp.eq.s32.totalorder %s30, 0
      %p293 = por %p291, %p292
      %s295 = sadd.s32 %s294, 1
      %p298 = scmp.eq.s32.totalorder %s24, 1
      %p299 = scmp.ne.s32.totalorder %s294, %s296
      %p300 = scmp.eq.s32.totalorder %s24, 0
      %p301 = por %p299, %p300
      %p302 = scmp.ne.s32.totalorder %s294, %s296
      %p303 = scmp.eq.s32.totalorder %s29, 1
      %p304 = por %p302, %p303
      %p305 = scmp.ne.s32.totalorder %s296, %s297
      %p306 = scmp.eq.s32.totalorder %s29, 0
      %p307 = por %p305, %p306
      %p308 = scmp.ne.s32.totalorder %s296, %s297
      %p309 = scmp.eq.s32.totalorder %s30, 1
      %p310 = por %p308, %p309
      %p312 = scmp.ne.s32.totalorder %s297, %s311
      %p313 = scmp.eq.s32.totalorder %s30, 0
      %p314 = por %p312, %p313
      %s316 = sadd.s32 %s315, 1
      %p319 = scmp.eq.s32.totalorder %s24, 1
      %p320 = scmp.ne.s32.totalorder %s315, %s317
      %p321 = scmp.eq.s32.totalorder %s24, 0
      %p322 = por %p320, %p321
      %p323 = scmp.ne.s32.totalorder %s315, %s317
      %p324 = scmp.eq.s32.totalorder %s29, 1
      %p325 = por %p323, %p324
      %p326 = scmp.ne.s32.totalorder %s317, %s318
      %p327 = scmp.eq.s32.totalorder %s29, 0
      %p328 = por %p326, %p327
      %p329 = scmp.ne.s32.totalorder %s317, %s318
      %p330 = scmp.eq.s32.totalorder %s30, 1
      %p331 = por %p329, %p330
      %p333 = scmp.ne.s32.totalorder %s318, %s332
      %p334 = scmp.eq.s32.totalorder %s30, 0
      %p335 = por %p333, %p334
      %s337 = sadd.s32 %s336, 1
      %p340 = scmp.eq.s32.totalorder %s24, 1
      %p341 = scmp.ne.s32.totalorder %s336, %s338
      %p342 = scmp.eq.s32.totalorder %s24, 0
      %p343 = por %p341, %p342
      %p344 = scmp.ne.s32.totalorder %s336, %s338
      %p345 = scmp.eq.s32.totalorder %s29, 1
      %p346 = por %p344, %p345
      %p347 = scmp.ne.s32.totalorder %s338, %s339
      %p348 = scmp.eq.s32.totalorder %s29, 0
      %p349 = por %p347, %p348
      %p350 = scmp.ne.s32.totalorder %s338, %s339
      %p351 = scmp.eq.s32.totalorder %s30, 1
      %p352 = por %p350, %p351
      %p354 = scmp.ne.s32.totalorder %s339, %s353
      %p355 = scmp.eq.s32.totalorder %s30, 0
      %p356 = por %p354, %p355
      %s357 = ssub.s32 %s24, %s31
      %p358 = scmp.eq.s32.totalorder %s357, 0
      %s360 = sadd.s32 %s359, 1
      %s361 = scalar_select %p358, %s359, %s360
      %p364 = pneg %p358
      %p365 = scmp.eq.s32.totalorder %s24, 1
      %p366 = por %p364, %p365
      %p367 = scmp.ne.s32.totalorder %s359, %s362
      %p368 = scmp.eq.s32.totalorder %s24, 0
      %p369 = por %p367, %p368
      %p370 = scmp.ne.s32.totalorder %s359, %s362
      %p371 = scmp.eq.s32.totalorder %s29, 1
      %p372 = por %p370, %p371
      %p373 = scmp.ne.s32.totalorder %s362, %s363
      %p374 = scmp.eq.s32.totalorder %s29, 0
      %p375 = por %p373, %p374
      %p376 = scmp.ne.s32.totalorder %s362, %s363
      %p377 = scmp.eq.s32.totalorder %s30, 1
      %p378 = por %p376, %p377
      %p380 = scmp.ne.s32.totalorder %s363, %s379
      %p381 = scmp.eq.s32.totalorder %s30, 0
      %p382 = por %p380, %p381
      %p383 = scmp.le.s32.totalorder 1, %s24
      %p384 = scmp.lt.s32.totalorder %s24, 3
      %p385 = pnand %p383, %p384
      %p386 = pneg %p385
      // Predicated region
      $region9: #{skip_forward.1} parent=5 // pred_check
        _
      $region10: #{skip_forward.1} parent=5 // pred_check_branch
        %388 = sbr.rel (%p385) target = $region12
      $region11: #{skip_forward.1} parent=5 // pred_region
        %s389 = ssub.s32 %s24, 1
        // Predicated region
        $region13: #{skip_forward.1} parent=11 // pred_check
          %p390 = pneg %p97
        $region14: #{skip_forward.1} parent=11 // pred_check_branch
          %392 = sbr.rel (%p390) target = $region16
        $region15: #{skip_forward.1} parent=11 // pred_region
          _
        $region16: #{skip_forward.1} parent=11 // pred_fallthru
          _
        // Predicated region
        $region17: #{skip_forward.1} parent=11 // pred_check
          %p393 = pneg %p118
        $region18: #{skip_forward.1} parent=11 // pred_check_branch
          %395 = sbr.rel (%p393) target = $region20
        $region19: #{skip_forward.1} parent=11 // pred_region
          _
        $region20: #{skip_forward.1} parent=11 // pred_fallthru
          _
        // Predicated region
        $region21: #{skip_forward.1} parent=11 // pred_check
          %p396 = pneg %p139
        $region22: #{skip_forward.1} parent=11 // pred_check_branch
          %398 = sbr.rel (%p396) target = $region24
        $region23: #{skip_forward.1} parent=11 // pred_region
          _
        $region24: #{skip_forward.1} parent=11 // pred_fallthru
          _
        // Predicated region
        $region25: #{skip_forward.1} parent=11 // pred_check
          %p399 = pneg %p160
        $region26: #{skip_forward.1} parent=11 // pred_check_branch
          %401 = sbr.rel (%p399) target = $region28
        $region27: #{skip_forward.1} parent=11 // pred_region
          _
        $region28: #{skip_forward.1} parent=11 // pred_fallthru
          _
        // Predicated region
        $region29: #{skip_forward.1} parent=11 // pred_check
          %p402 = pneg %p181
        $region30: #{skip_forward.1} parent=11 // pred_check_branch
          %404 = sbr.rel (%p402) target = $region32
        $region31: #{skip_forward.1} parent=11 // pred_region
          _
        $region32: #{skip_forward.1} parent=11 // pred_fallthru
          _
        // Predicated region
        $region33: #{skip_forward.1} parent=11 // pred_check
          %p405 = pneg %p202
        $region34: #{skip_forward.1} parent=11 // pred_check_branch
          %407 = sbr.rel (%p405) target = $region36
        $region35: #{skip_forward.1} parent=11 // pred_region
          _
        $region36: #{skip_forward.1} parent=11 // pred_fallthru
          _
        // Predicated region
        $region37: #{skip_forward.1} parent=11 // pred_check
          %p408 = pneg %p223
        $region38: #{skip_forward.1} parent=11 // pred_check_branch
          %410 = sbr.rel (%p408) target = $region40
        $region39: #{skip_forward.1} parent=11 // pred_region
          _
        $region40: #{skip_forward.1} parent=11 // pred_fallthru
          _
        // Predicated region
        $region41: #{skip_forward.1} parent=11 // pred_check
          %p411 = pneg %p244
        $region42: #{skip_forward.1} parent=11 // pred_check_branch
          %413 = sbr.rel (%p411) target = $region44
        $region43: #{skip_forward.1} parent=11 // pred_region
          _
        $region44: #{skip_forward.1} parent=11 // pred_fallthru
          _
        // Predicated region
        $region45: #{skip_forward.1} parent=11 // pred_check
          %p414 = pneg %p265
        $region46: #{skip_forward.1} parent=11 // pred_check_branch
          %416 = sbr.rel (%p414) target = $region48
        $region47: #{skip_forward.1} parent=11 // pred_region
          _
        $region48: #{skip_forward.1} parent=11 // pred_fallthru
          _
        // Predicated region
        $region49: #{skip_forward.1} parent=11 // pred_check
          %p417 = pneg %p286
        $region50: #{skip_forward.1} parent=11 // pred_check_branch
          %419 = sbr.rel (%p417) target = $region52
        $region51: #{skip_forward.1} parent=11 // pred_region
          _
        $region52: #{skip_forward.1} parent=11 // pred_fallthru
          _
        // Predicated region
        $region53: #{skip_forward.1} parent=11 // pred_check
          %p420 = pneg %p307
        $region54: #{skip_forward.1} parent=11 // pred_check_branch
          %422 = sbr.rel (%p420) target = $region56
        $region55: #{skip_forward.1} parent=11 // pred_region
          _
        $region56: #{skip_forward.1} parent=11 // pred_fallthru
          _
        // Predicated region
        $region57: #{skip_forward.1} parent=11 // pred_check
          %p423 = pneg %p328
        $region58: #{skip_forward.1} parent=11 // pred_check_branch
          %425 = sbr.rel (%p423) target = $region60
        $region59: #{skip_forward.1} parent=11 // pred_region
          _
        $region60: #{skip_forward.1} parent=11 // pred_fallthru
          _
        // Predicated region
        $region61: #{skip_forward.1} parent=11 // pred_check
          %p426 = pneg %p349
        $region62: #{skip_forward.1} parent=11 // pred_check_branch
          %428 = sbr.rel (%p426) target = $region64
        $region63: #{skip_forward.1} parent=11 // pred_region
          _
        $region64: #{skip_forward.1} parent=11 // pred_fallthru
          _
      $region12: #{skip_forward.1} parent=5 // pred_fallthru
        _
      %p429 = scmp.lt.s32.totalorder %s24, 2
      // Predicated region
      $region65: #{skip_forward.1} parent=5 // pred_check
        %p430 = pneg %p429
      $region66: #{skip_forward.1} parent=5 // pred_check_branch
        %432 = sbr.rel (%p430) target = $region68
      $region67: #{skip_forward.1} parent=5 // pred_region
        // Predicated region
        $region69: #{skip_forward.1} parent=67 // pred_check
          %p433 = pneg %p44
        $region70: #{skip_forward.1} parent=67 // pred_check_branch
          %435 = sbr.rel (%p433) target = $region72
        $region71: #{skip_forward.1} parent=67 // pred_region
          %p436 = scmp.lt.s32.totalorder %s24, 1
          %s437 = scalar_select %p436, %s24, 1
          %s438 = smul.addr %s437, 16
          %s439 = smul.addr %s438, 8
          %s440 = scalar_lea.vmem %s0, %s439
        $region72: #{skip_forward.1} parent=67 // pred_fallthru
          _
        // Predicated region
        $region73: #{skip_forward.1} parent=67 // pred_check
          %p441 = pneg %p70
        $region74: #{skip_forward.1} parent=67 // pred_check_branch
          %443 = sbr.rel (%p441) target = $region76
        $region75: #{skip_forward.1} parent=67 // pred_region
          %p444 = scmp.lt.s32.totalorder %s24, 1
          %s445 = scalar_select %p444, %s24, 1
          %s446 = smul.addr %s445, 16
          %s447 = smul.addr %s446, 8
          %s448 = scalar_lea.vmem %s1, %s447
        $region76: #{skip_forward.1} parent=67 // pred_fallthru
          _
      $region68: #{skip_forward.1} parent=5 // pred_fallthru
        _
      %p449 = scmp.le.s32.totalorder 1, %s24
      %p450 = scmp.lt.s32.totalorder %s24, 3
      %p451 = pnand %p449, %p450
      %p452 = pneg %p451
      // Predicated region
      $region77: #{skip_forward.1} parent=5 // pred_check
        _
      $region78: #{skip_forward.1} parent=5 // pred_check_branch
        %454 = sbr.rel (%p451) target = $region80
      $region79: #{skip_forward.1} parent=5 // pred_region
        %s455 = ssub.s32 %s24, 1
        %p456 = scmp.lt.s32.totalorder %s29, 1
        %s457 = scalar_select %p456, %s29, 1
        %s458 = smul.addr %s457, 16
        %s459 = smul.addr %s458, 8
        %s460 = scalar_lea.vmem %s0, %s459
        %p461 = pneg %p50
        %p462 = pneg %p47
        %p463 = scmp.lt.s32.totalorder %s29, 1
        %s464 = scalar_select %p463, %s29, 1
        %s465 = smul.addr %s464, 16
        %s466 = smul.addr %s465, 8
        %s467 = scalar_lea.vmem %s1, %s466
        %p468 = pneg %p76
        %p469 = pneg %p73
        %p470 = pneg %p97
        %p471 = pneg %p94
        %p472 = pneg %p118
        %p473 = pneg %p115
        %p474 = pneg %p139
        %p475 = pneg %p136
        %p476 = pneg %p160
        %p477 = pneg %p157
        %p478 = pneg %p181
        %p479 = pneg %p178
        %p480 = pneg %p202
        %p481 = pneg %p199
        %p482 = pneg %p223
        %p483 = pneg %p220
        %p484 = pneg %p244
        %p485 = pneg %p241
        %p486 = pneg %p265
        %p487 = pneg %p262
        %p488 = pneg %p286
        %p489 = pneg %p283
        %p490 = pneg %p307
        %p491 = pneg %p304
        %p492 = pneg %p328
        %p493 = pneg %p325
        %p494 = pneg %p349
        %p495 = pneg %p346
        %p496 = pneg %p375
        %p497 = pneg %p372
        %s498 = sand.u32 %s362, 1
        %s499 = scalar_lea.sflag [#allocation3], %s498
        %s500 = sand.u32 %s362, 1
        %s501 = smul.addr %s500, 128
        %s502 = scalar_lea.vmem [#allocation2], %s501
        %p503 = scmp.lt.s32.totalorder %s29, 1
        %s504 = scalar_select %p503, %s29, 1
        %s505 = smul.addr %s504, 16
        %s506 = smul.addr %s505, 8
        %s507 = scalar_lea.vmem %s0, %s506
        %p508 = scmp.lt.s32.totalorder %s29, 1
        %s509 = scalar_select %p508, %s29, 1
        %s510 = smul.addr %s509, 16
        %s511 = smul.addr %s510, 8
        %s512 = scalar_lea.vmem %s1, %s511
        %v513 = vld [vmem:[%s507] sm:$0xff]
        %v514 = vld [vmem:[%s507 + $0x8] sm:$0xff]
        %v515 = vld [vmem:[%s507 + $0x10] sm:$0xff]
        %v516 = vld [vmem:[%s507 + $0x18] sm:$0xff]
        %v517 = vld [vmem:[%s507 + $0x20] sm:$0xff]
        %v518 = vld [vmem:[%s507 + $0x28] sm:$0xff]
        %v519 = vld [vmem:[%s507 + $0x30] sm:$0xff]
        %v520 = vld [vmem:[%s507 + $0x38] sm:$0xff]
        %v521 = vld [vmem:[%s507 + $0x40] sm:$0xff]
        %v522 = vld [vmem:[%s507 + $0x48] sm:$0xff]
        %v523 = vld [vmem:[%s507 + $0x50] sm:$0xff]
        %v524 = vld [vmem:[%s507 + $0x58] sm:$0xff]
        %v525 = vld [vmem:[%s507 + $0x60] sm:$0xff]
        %v526 = vld [vmem:[%s507 + $0x68] sm:$0xff]
        %v527 = vld [vmem:[%s507 + $0x70] sm:$0xff]
        %v528 = vld [vmem:[%s507 + $0x78] sm:$0xff]
        %v529 = vld [vmem:[%s512] sm:$0xff]
        %v530 = vld [vmem:[%s512 + $0x8] sm:$0xff]
        %v531 = vld [vmem:[%s512 + $0x10] sm:$0xff]
        %v532 = vld [vmem:[%s512 + $0x18] sm:$0xff]
        %v533 = vld [vmem:[%s512 + $0x20] sm:$0xff]
        %v534 = vld [vmem:[%s512 + $0x28] sm:$0xff]
        %v535 = vld [vmem:[%s512 + $0x30] sm:$0xff]
        %v536 = vld [vmem:[%s512 + $0x38] sm:$0xff]
        %v537 = vld [vmem:[%s512 + $0x40] sm:$0xff]
        %v538 = vld [vmem:[%s512 + $0x48] sm:$0xff]
        %v539 = vld [vmem:[%s512 + $0x50] sm:$0xff]
        %v540 = vld [vmem:[%s512 + $0x58] sm:$0xff]
        %v541 = vld [vmem:[%s512 + $0x60] sm:$0xff]
        %v542 = vld [vmem:[%s512 + $0x68] sm:$0xff]
        %v543 = vld [vmem:[%s512 + $0x70] sm:$0xff]
        %v544 = vld [vmem:[%s512 + $0x78] sm:$0xff]
        %v545 = vld [vmem:[%s2] sm:$0xff]
        %v546 = vld [vmem:[%s2 + $0x8] sm:$0xff]
        %v547 = vld [vmem:[%s2 + $0x10] sm:$0xff]
        %v548 = vld [vmem:[%s2 + $0x18] sm:$0xff]
        %v549 = vld [vmem:[%s2 + $0x20] sm:$0xff]
        %v550 = vld [vmem:[%s2 + $0x28] sm:$0xff]
        %v551 = vld [vmem:[%s2 + $0x30] sm:$0xff]
        %v552 = vld [vmem:[%s2 + $0x38] sm:$0xff]
        %v553 = vld [vmem:[%s3] sm:$0xff]
        %v554 = vld [vmem:[%s3 + $0x8] sm:$0xff]
        %v555 = vld [vmem:[%s3 + $0x10] sm:$0xff]
        %v556 = vld [vmem:[%s3 + $0x18] sm:$0xff]
        %v557 = vld [vmem:[%s3 + $0x20] sm:$0xff]
        %v558 = vld [vmem:[%s3 + $0x28] sm:$0xff]
        %v559 = vld [vmem:[%s3 + $0x30] sm:$0xff]
        %v560 = vld [vmem:[%s3 + $0x38] sm:$0xff]
        %562 = vset.pattern.permute.xlu0 0
        %563 = vperm.xlu0 %562, %v553
        %v564 = vpop.permute.xlu0 %563
        %567 = vset.pattern.permute.xlu0 0
        %568 = vperm.xlu0 %567, %v554
        %v569 = vpop.permute.xlu0 %568
        %572 = vset.pattern.permute.xlu0 0
        %573 = vperm.xlu0 %572, %v555
        %v574 = vpop.permute.xlu0 %573
        %577 = vset.pattern.permute.xlu0 0
        %578 = vperm.xlu0 %577, %v556
        %v579 = vpop.permute.xlu0 %578
        %582 = vset.pattern.permute.xlu0 0
        %583 = vperm.xlu0 %582, %v557
        %v584 = vpop.permute.xlu0 %583
        %587 = vset.pattern.permute.xlu0 0
        %588 = vperm.xlu0 %587, %v558
        %v589 = vpop.permute.xlu0 %588
        %592 = vset.pattern.permute.xlu0 0
        %593 = vperm.xlu0 %592, %v559
        %v594 = vpop.permute.xlu0 %593
        %597 = vset.pattern.permute.xlu0 0
        %598 = vperm.xlu0 %597, %v560
        %v599 = vpop.permute.xlu0 %598
        %601 = vmatpush.msra.mxu0 %v528
        %602 = vmatpush.msra.mxu0 %v527
        %603 = vmatpush.msra.mxu0 %v526
        %604 = vmatpush.msra.mxu0 %v525
        %605 = vmatpush.msra.mxu0 %v524
        %606 = vmatpush.msra.mxu0 %v523
        %607 = vmatpush.msra.mxu0 %v522
        %608 = vmatpush.msra.mxu0 %v521
        %609 = vmatpush.msra.mxu0 %v520
        %610 = vmatpush.msra.mxu0 %v519
        %611 = vmatpush.msra.mxu0 %v518
        %612 = vmatpush.msra.mxu0 %v517
        %613 = vmatpush.msra.mxu0 %v516
        %614 = vmatpush.msra.mxu0 %v515
        %615 = vmatpush.msra.mxu0 %v514
        %616 = vmatpush.msra.mxu0 %v513
        %617 = vmatmul.f32.gmra.mxu0 %v545
        %v618 = vpop.f32.mrf.mxu0
        %v619 = vadd.f32 %v564, %v618
        %620 = vmatmul.f32.gmra.mxu0 %v546
        %v621 = vpop.f32.mrf.mxu0
        %v622 = vadd.f32 %v569, %v621
        %623 = vmatmul.f32.gmra.mxu0 %v547
        %v624 = vpop.f32.mrf.mxu0
        %v625 = vadd.f32 %v574, %v624
        %626 = vmatmul.f32.gmra.mxu0 %v548
        %v627 = vpop.f32.mrf.mxu0
        %v628 = vadd.f32 %v579, %v627
        %629 = vmatmul.f32.gmra.mxu0 %v549
        %v630 = vpop.f32.mrf.mxu0
        %v631 = vadd.f32 %v584, %v630
        %632 = vmatmul.f32.gmra.mxu0 %v550
        %v633 = vpop.f32.mrf.mxu0
        %v634 = vadd.f32 %v589, %v633
        %635 = vmatmul.f32.gmra.mxu0 %v551
        %v636 = vpop.f32.mrf.mxu0
        %v637 = vadd.f32 %v594, %v636
        %638 = vmatmul.f32.gmra.mxu0 %v552
        %v639 = vpop.f32.mrf.mxu0
        %v640 = vadd.f32 %v599, %v639
        %641 = vdwg.mxu0
        %v642 = vld [vmem:[%s4] sm:$0xff]
        %v643 = vld [vmem:[%s4 + $0x8] sm:$0xff]
        %v644 = vld [vmem:[%s4 + $0x10] sm:$0xff]
        %v645 = vld [vmem:[%s4 + $0x18] sm:$0xff]
        %v646 = vld [vmem:[%s4 + $0x20] sm:$0xff]
        %v647 = vld [vmem:[%s4 + $0x28] sm:$0xff]
        %v648 = vld [vmem:[%s4 + $0x30] sm:$0xff]
        %v649 = vld [vmem:[%s4 + $0x38] sm:$0xff]
        %v650 = vld [vmem:[%s4 + $0x40] sm:$0xff]
        %v651 = vld [vmem:[%s4 + $0x48] sm:$0xff]
        %v652 = vld [vmem:[%s4 + $0x50] sm:$0xff]
        %v653 = vld [vmem:[%s4 + $0x58] sm:$0xff]
        %v654 = vld [vmem:[%s4 + $0x60] sm:$0xff]
        %v655 = vld [vmem:[%s4 + $0x68] sm:$0xff]
        %v656 = vld [vmem:[%s4 + $0x70] sm:$0xff]
        %v657 = vld [vmem:[%s4 + $0x78] sm:$0xff]
        %vm658 = vcmask 523264
        %v660 = vsel %vm658, %v642, 0
        %v663 = vsel %vm658, %v643, 0
        %v666 = vsel %vm658, %v644, 0
        %v669 = vsel %vm658, %v645, 0
        %v672 = vsel %vm658, %v646, 0
        %v675 = vsel %vm658, %v647, 0
        %v678 = vsel %vm658, %v648, 0
        %v681 = vsel %vm658, %v649, 0
        %v684 = vsel %vm658, %v650, 0
        %v687 = vsel %vm658, %v651, 0
        %v690 = vsel %vm658, %v652, 0
        %v693 = vsel %vm658, %v653, 0
        %v696 = vsel %vm658, %v654, 0
        %v699 = vsel %vm658, %v655, 0
        %v702 = vsel %vm658, %v656, 0
        %v705 = vsel %vm658, %v657, 0
        %707 = vmatpush.msra.mxu0 0.0
        %708 = vmatpush.msra.mxu0 0.0
        %709 = vmatpush.msra.mxu0 0.0
        %710 = vmatpush.msra.mxu0 0.0
        %711 = vmatpush.msra.mxu0 0.0
        %712 = vmatpush.msra.mxu0 0.0
        %713 = vmatpush.msra.mxu0 0.0
        %714 = vmatpush.msra.mxu0 0.0
        %715 = vmatpush.msra.mxu0 %v640
        %716 = vmatpush.msra.mxu0 %v637
        %717 = vmatpush.msra.mxu0 %v634
        %718 = vmatpush.msra.mxu0 %v631
        %719 = vmatpush.msra.mxu0 %v628
        %720 = vmatpush.msra.mxu0 %v625
        %721 = vmatpush.msra.mxu0 %v622
        %722 = vmatpush.msra.mxu0 %v619
        %723 = vmatmul.f32.gmra.mxu0 %v660
        %v724 = vpop.f32.mrf.mxu0
        %v725 = vadd.f32 0.0, %v724
        %726 = vmatmul.f32.gmra.mxu0 %v663
        %v727 = vpop.f32.mrf.mxu0
        %v728 = vadd.f32 0.0, %v727
        %729 = vmatmul.f32.gmra.mxu0 %v666
        %v730 = vpop.f32.mrf.mxu0
        %v731 = vadd.f32 0.0, %v730
        %732 = vmatmul.f32.gmra.mxu0 %v669
        %v733 = vpop.f32.mrf.mxu0
        %v734 = vadd.f32 0.0, %v733
        %735 = vmatmul.f32.gmra.mxu0 %v672
        %v736 = vpop.f32.mrf.mxu0
        %v737 = vadd.f32 0.0, %v736
        %738 = vmatmul.f32.gmra.mxu0 %v675
        %v739 = vpop.f32.mrf.mxu0
        %v740 = vadd.f32 0.0, %v739
        %741 = vmatmul.f32.gmra.mxu0 %v678
        %v742 = vpop.f32.mrf.mxu0
        %v743 = vadd.f32 0.0, %v742
        %744 = vmatmul.f32.gmra.mxu0 %v681
        %v745 = vpop.f32.mrf.mxu0
        %v746 = vadd.f32 0.0, %v745
        %747 = vmatmul.f32.gmra.mxu0 %v684
        %v748 = vpop.f32.mrf.mxu0
        %v749 = vadd.f32 0.0, %v748
        %750 = vmatmul.f32.gmra.mxu0 %v687
        %v751 = vpop.f32.mrf.mxu0
        %v752 = vadd.f32 0.0, %v751
        %753 = vmatmul.f32.gmra.mxu0 %v690
        %v754 = vpop.f32.mrf.mxu0
        %v755 = vadd.f32 0.0, %v754
        %756 = vmatmul.f32.gmra.mxu0 %v693
        %v757 = vpop.f32.mrf.mxu0
        %v758 = vadd.f32 0.0, %v757
        %759 = vmatmul.f32.gmra.mxu0 %v696
        %v760 = vpop.f32.mrf.mxu0
        %v761 = vadd.f32 0.0, %v760
        %762 = vmatmul.f32.gmra.mxu0 %v699
        %v763 = vpop.f32.mrf.mxu0
        %v764 = vadd.f32 0.0, %v763
        %765 = vmatmul.f32.gmra.mxu0 %v702
        %v766 = vpop.f32.mrf.mxu0
        %v767 = vadd.f32 0.0, %v766
        %768 = vmatmul.f32.gmra.mxu0 %v705
        %v769 = vpop.f32.mrf.mxu0
        %v770 = vadd.f32 0.0, %v769
        %771 = vdwg.mxu0
        %v772 = vld [vmem:[%s5] sm:$0xff]
        %v773 = vld [vmem:[%s5 + $0x8] sm:$0xff]
        %vm774 = vcmask 130048
        %v776 = vsel %vm774, %v725, 0
        %v779 = vsel %vm774, %v728, 0
        %v782 = vsel %vm774, %v731, 0
        %v785 = vsel %vm774, %v734, 0
        %v788 = vsel %vm774, %v737, 0
        %v791 = vsel %vm774, %v740, 0
        %v794 = vsel %vm774, %v743, 0
        %v797 = vsel %vm774, %v746, 0
        %v800 = vsel %vm774, %v749, 0
        %v803 = vsel %vm774, %v752, 0
        %v806 = vsel %vm774, %v755, 0
        %v809 = vsel %vm774, %v758, 0
        %v812 = vsel %vm774, %v761, 0
        %v815 = vsel %vm774, %v764, 0
        %v818 = vsel %vm774, %v767, 0
        %v821 = vsel %vm774, %v770, 0
        %823 = vmatpush.msra.mxu0 0.0
        %824 = vmatpush.msra.mxu0 0.0
        %825 = vmatpush.msra.mxu0 0.0
        %826 = vmatpush.msra.mxu0 0.0
        %827 = vmatpush.msra.mxu0 0.0
        %828 = vmatpush.msra.mxu0 0.0
        %829 = vmatpush.msra.mxu0 0.0
        %830 = vmatpush.msra.mxu0 0.0
        %831 = vmatpush.msra.mxu0 0.0
        %832 = vmatpush.msra.mxu0 0.0
        %833 = vmatpush.msra.mxu0 0.0
        %834 = vmatpush.msra.mxu0 0.0
        %835 = vmatpush.msra.mxu0 0.0
        %836 = vmatpush.msra.mxu0 0.0
        %837 = vmatpush.msra.mxu0 %v773
        %838 = vmatpush.msra.mxu0 %v772
        %839 = vmatmul.f32.gmra.mxu0 %v776
        %v840 = vpop.f32.mrf.mxu0
        %v841 = vadd.f32 0.0, %v840
        %842 = vmatmul.f32.gmra.mxu0 %v779
        %v843 = vpop.f32.mrf.mxu0
        %v844 = vadd.f32 0.0, %v843
        %845 = vmatmul.f32.gmra.mxu0 %v782
        %v846 = vpop.f32.mrf.mxu0
        %v847 = vadd.f32 0.0, %v846
        %848 = vmatmul.f32.gmra.mxu0 %v785
        %v849 = vpop.f32.mrf.mxu0
        %v850 = vadd.f32 0.0, %v849
        %851 = vmatmul.f32.gmra.mxu0 %v788
        %v852 = vpop.f32.mrf.mxu0
        %v853 = vadd.f32 0.0, %v852
        %854 = vmatmul.f32.gmra.mxu0 %v791
        %v855 = vpop.f32.mrf.mxu0
        %v856 = vadd.f32 0.0, %v855
        %857 = vmatmul.f32.gmra.mxu0 %v794
        %v858 = vpop.f32.mrf.mxu0
        %v859 = vadd.f32 0.0, %v858
        %860 = vmatmul.f32.gmra.mxu0 %v797
        %v861 = vpop.f32.mrf.mxu0
        %v862 = vadd.f32 0.0, %v861
        %863 = vmatmul.f32.gmra.mxu0 %v800
        %v864 = vpop.f32.mrf.mxu0
        %v865 = vadd.f32 0.0, %v864
        %866 = vmatmul.f32.gmra.mxu0 %v803
        %v867 = vpop.f32.mrf.mxu0
        %v868 = vadd.f32 0.0, %v867
        %869 = vmatmul.f32.gmra.mxu0 %v806
        %v870 = vpop.f32.mrf.mxu0
        %v871 = vadd.f32 0.0, %v870
        %872 = vmatmul.f32.gmra.mxu0 %v809
        %v873 = vpop.f32.mrf.mxu0
        %v874 = vadd.f32 0.0, %v873
        %875 = vmatmul.f32.gmra.mxu0 %v812
        %v876 = vpop.f32.mrf.mxu0
        %v877 = vadd.f32 0.0, %v876
        %878 = vmatmul.f32.gmra.mxu0 %v815
        %v879 = vpop.f32.mrf.mxu0
        %v880 = vadd.f32 0.0, %v879
        %881 = vmatmul.f32.gmra.mxu0 %v818
        %v882 = vpop.f32.mrf.mxu0
        %v883 = vadd.f32 0.0, %v882
        %884 = vmatmul.f32.gmra.mxu0 %v821
        %v885 = vpop.f32.mrf.mxu0
        %v886 = vadd.f32 0.0, %v885
        %887 = vdwg.mxu0
        %v888 = vld [vmem:[%s6] sm:$0xff]
        %v889 = vld [vmem:[%s6 + $0x8] sm:$0xff]
        %v890 = vld [vmem:[%s6 + $0x10] sm:$0xff]
        %v891 = vld [vmem:[%s6 + $0x18] sm:$0xff]
        %v892 = vld [vmem:[%s6 + $0x20] sm:$0xff]
        %v893 = vld [vmem:[%s6 + $0x28] sm:$0xff]
        %v894 = vld [vmem:[%s6 + $0x30] sm:$0xff]
        %v895 = vld [vmem:[%s6 + $0x38] sm:$0xff]
        %v896 = vld [vmem:[%s6 + $0x40] sm:$0xff]
        %v897 = vld [vmem:[%s6 + $0x48] sm:$0xff]
        %v898 = vld [vmem:[%s6 + $0x50] sm:$0xff]
        %v899 = vld [vmem:[%s6 + $0x58] sm:$0xff]
        %v900 = vld [vmem:[%s6 + $0x60] sm:$0xff]
        %v901 = vld [vmem:[%s6 + $0x68] sm:$0xff]
        %v902 = vld [vmem:[%s6 + $0x70] sm:$0xff]
        %v903 = vld [vmem:[%s6 + $0x78] sm:$0xff]
        %v904 = vld [vmem:[%s7] sm:$0xff]
        %v905 = vld [vmem:[%s7 + $0x8] sm:$0xff]
        %v906 = vld [vmem:[%s7 + $0x10] sm:$0xff]
        %v907 = vld [vmem:[%s7 + $0x18] sm:$0xff]
        %v908 = vld [vmem:[%s7 + $0x20] sm:$0xff]
        %v909 = vld [vmem:[%s7 + $0x28] sm:$0xff]
        %v910 = vld [vmem:[%s7 + $0x30] sm:$0xff]
        %v911 = vld [vmem:[%s7 + $0x38] sm:$0xff]
        %v912 = vld [vmem:[%s7 + $0x40] sm:$0xff]
        %v913 = vld [vmem:[%s7 + $0x48] sm:$0xff]
        %v914 = vld [vmem:[%s7 + $0x50] sm:$0xff]
        %v915 = vld [vmem:[%s7 + $0x58] sm:$0xff]
        %v916 = vld [vmem:[%s7 + $0x60] sm:$0xff]
        %v917 = vld [vmem:[%s7 + $0x68] sm:$0xff]
        %v918 = vld [vmem:[%s7 + $0x70] sm:$0xff]
        %v919 = vld [vmem:[%s7 + $0x78] sm:$0xff]
        %920 = vmatpush.msra.mxu0 %v544
        %921 = vmatpush.msra.mxu0 %v543
        %922 = vmatpush.msra.mxu0 %v542
        %923 = vmatpush.msra.mxu0 %v541
        %924 = vmatpush.msra.mxu0 %v540
        %925 = vmatpush.msra.mxu0 %v539
        %926 = vmatpush.msra.mxu0 %v538
        %927 = vmatpush.msra.mxu0 %v537
        %928 = vmatpush.msra.mxu0 %v536
        %929 = vmatpush.msra.mxu0 %v535
        %930 = vmatpush.msra.mxu0 %v534
        %931 = vmatpush.msra.mxu0 %v533
        %932 = vmatpush.msra.mxu0 %v532
        %933 = vmatpush.msra.mxu0 %v531
        %934 = vmatpush.msra.mxu0 %v530
        %935 = vmatpush.msra.mxu0 %v529
        %936 = vmatmul.f32.gmra.mxu0 %v904
        %v937 = vpop.f32.mrf.mxu0
        %v938 = vadd.f32 0.0, %v937
        %939 = vmatmul.f32.gmra.mxu0 %v905
        %v940 = vpop.f32.mrf.mxu0
        %v941 = vadd.f32 0.0, %v940
        %942 = vmatmul.f32.gmra.mxu0 %v906
        %v943 = vpop.f32.mrf.mxu0
        %v944 = vadd.f32 0.0, %v943
        %945 = vmatmul.f32.gmra.mxu0 %v907
        %v946 = vpop.f32.mrf.mxu0
        %v947 = vadd.f32 0.0, %v946
        %948 = vmatmul.f32.gmra.mxu0 %v908
        %v949 = vpop.f32.mrf.mxu0
        %v950 = vadd.f32 0.0, %v949
        %951 = vmatmul.f32.gmra.mxu0 %v909
        %v952 = vpop.f32.mrf.mxu0
        %v953 = vadd.f32 0.0, %v952
        %954 = vmatmul.f32.gmra.mxu0 %v910
        %v955 = vpop.f32.mrf.mxu0
        %v956 = vadd.f32 0.0, %v955
        %957 = vmatmul.f32.gmra.mxu0 %v911
        %v958 = vpop.f32.mrf.mxu0
        %v959 = vadd.f32 0.0, %v958
        %960 = vmatmul.f32.gmra.mxu0 %v912
        %v961 = vpop.f32.mrf.mxu0
        %v962 = vadd.f32 0.0, %v961
        %963 = vmatmul.f32.gmra.mxu0 %v913
        %v964 = vpop.f32.mrf.mxu0
        %v965 = vadd.f32 0.0, %v964
        %966 = vmatmul.f32.gmra.mxu0 %v914
        %v967 = vpop.f32.mrf.mxu0
        %v968 = vadd.f32 0.0, %v967
        %969 = vmatmul.f32.gmra.mxu0 %v915
        %v970 = vpop.f32.mrf.mxu0
        %v971 = vadd.f32 0.0, %v970
        %972 = vmatmul.f32.gmra.mxu0 %v916
        %v973 = vpop.f32.mrf.mxu0
        %v974 = vadd.f32 0.0, %v973
        %975 = vmatmul.f32.gmra.mxu0 %v917
        %v976 = vpop.f32.mrf.mxu0
        %v977 = vadd.f32 0.0, %v976
        %978 = vmatmul.f32.gmra.mxu0 %v918
        %v979 = vpop.f32.mrf.mxu0
        %v980 = vadd.f32 0.0, %v979
        %981 = vmatmul.f32.gmra.mxu0 %v919
        %v982 = vpop.f32.mrf.mxu0
        %v983 = vadd.f32 0.0, %v982
        %984 = vdwg.mxu0
        %985 = vmatpush.msra.mxu0 %v886
        %986 = vmatpush.msra.mxu0 %v883
        %987 = vmatpush.msra.mxu0 %v880
        %988 = vmatpush.msra.mxu0 %v877
        %989 = vmatpush.msra.mxu0 %v874
        %990 = vmatpush.msra.mxu0 %v871
        %991 = vmatpush.msra.mxu0 %v868
        %992 = vmatpush.msra.mxu0 %v865
        %993 = vmatpush.msra.mxu0 %v862
        %994 = vmatpush.msra.mxu0 %v859
        %995 = vmatpush.msra.mxu0 %v856
        %996 = vmatpush.msra.mxu0 %v853
        %997 = vmatpush.msra.mxu0 %v850
        %998 = vmatpush.msra.mxu0 %v847
        %999 = vmatpush.msra.mxu0 %v844
        %1000 = vmatpush.msra.mxu0 %v841
        %1001 = vmatmul.f32.gmra.mxu0 %v888
        %v1002 = vpop.f32.mrf.mxu0
        %v1003 = vadd.f32 %v938, %v1002
        %1004 = vmatmul.f32.gmra.mxu0 %v889
        %v1005 = vpop.f32.mrf.mxu0
        %v1006 = vadd.f32 %v941, %v1005
        %1007 = vmatmul.f32.gmra.mxu0 %v890
        %v1008 = vpop.f32.mrf.mxu0
        %v1009 = vadd.f32 %v944, %v1008
        %1010 = vmatmul.f32.gmra.mxu0 %v891
        %v1011 = vpop.f32.mrf.mxu0
        %v1012 = vadd.f32 %v947, %v1011
        %1013 = vmatmul.f32.gmra.mxu0 %v892
        %v1014 = vpop.f32.mrf.mxu0
        %v1015 = vadd.f32 %v950, %v1014
        %1016 = vmatmul.f32.gmra.mxu0 %v893
        %v1017 = vpop.f32.mrf.mxu0
        %v1018 = vadd.f32 %v953, %v1017
        %1019 = vmatmul.f32.gmra.mxu0 %v894
        %v1020 = vpop.f32.mrf.mxu0
        %v1021 = vadd.f32 %v956, %v1020
        %1022 = vmatmul.f32.gmra.mxu0 %v895
        %v1023 = vpop.f32.mrf.mxu0
        %v1024 = vadd.f32 %v959, %v1023
        %1025 = vmatmul.f32.gmra.mxu0 %v896
        %v1026 = vpop.f32.mrf.mxu0
        %v1027 = vadd.f32 %v962, %v1026
        %1028 = vmatmul.f32.gmra.mxu0 %v897
        %v1029 = vpop.f32.mrf.mxu0
        %v1030 = vadd.f32 %v965, %v1029
        %1031 = vmatmul.f32.gmra.mxu0 %v898
        %v1032 = vpop.f32.mrf.mxu0
        %v1033 = vadd.f32 %v968, %v1032
        %1034 = vmatmul.f32.gmra.mxu0 %v899
        %v1035 = vpop.f32.mrf.mxu0
        %v1036 = vadd.f32 %v971, %v1035
        %1037 = vmatmul.f32.gmra.mxu0 %v900
        %v1038 = vpop.f32.mrf.mxu0
        %v1039 = vadd.f32 %v974, %v1038
        %1040 = vmatmul.f32.gmra.mxu0 %v901
        %v1041 = vpop.f32.mrf.mxu0
        %v1042 = vadd.f32 %v977, %v1041
        %1043 = vmatmul.f32.gmra.mxu0 %v902
        %v1044 = vpop.f32.mrf.mxu0
        %v1045 = vadd.f32 %v980, %v1044
        %1046 = vmatmul.f32.gmra.mxu0 %v903
        %v1047 = vpop.f32.mrf.mxu0
        %v1048 = vadd.f32 %v983, %v1047
        %1049 = vdwg.mxu0
        %v1050 = vld [vmem:[%s8] sm:$0xff]
        %v1051 = vld [vmem:[%s8 + $0x8] sm:$0xff]
        %v1052 = vld [vmem:[%s8 + $0x10] sm:$0xff]
        %v1053 = vld [vmem:[%s8 + $0x18] sm:$0xff]
        %v1054 = vld [vmem:[%s8 + $0x20] sm:$0xff]
        %v1055 = vld [vmem:[%s8 + $0x28] sm:$0xff]
        %v1056 = vld [vmem:[%s8 + $0x30] sm:$0xff]
        %v1057 = vld [vmem:[%s8 + $0x38] sm:$0xff]
        %v1058 = vld [vmem:[%s8 + $0x40] sm:$0xff]
        %v1059 = vld [vmem:[%s8 + $0x48] sm:$0xff]
        %v1060 = vld [vmem:[%s8 + $0x50] sm:$0xff]
        %v1061 = vld [vmem:[%s8 + $0x58] sm:$0xff]
        %v1062 = vld [vmem:[%s8 + $0x60] sm:$0xff]
        %v1063 = vld [vmem:[%s8 + $0x68] sm:$0xff]
        %v1064 = vld [vmem:[%s8 + $0x70] sm:$0xff]
        %v1065 = vld [vmem:[%s8 + $0x78] sm:$0xff]
        %1067 = vset.pattern.permute.xlu0 0
        %1068 = vperm.xlu0 %1067, %v1050
        %v1069 = vpop.permute.xlu0 %1068
        %1072 = vset.pattern.permute.xlu0 0
        %1073 = vperm.xlu0 %1072, %v1051
        %v1074 = vpop.permute.xlu0 %1073
        %1077 = vset.pattern.permute.xlu0 0
        %1078 = vperm.xlu0 %1077, %v1052
        %v1079 = vpop.permute.xlu0 %1078
        %1082 = vset.pattern.permute.xlu0 0
        %1083 = vperm.xlu0 %1082, %v1053
        %v1084 = vpop.permute.xlu0 %1083
        %1087 = vset.pattern.permute.xlu0 0
        %1088 = vperm.xlu0 %1087, %v1054
        %v1089 = vpop.permute.xlu0 %1088
        %1092 = vset.pattern.permute.xlu0 0
        %1093 = vperm.xlu0 %1092, %v1055
        %v1094 = vpop.permute.xlu0 %1093
        %1097 = vset.pattern.permute.xlu0 0
        %1098 = vperm.xlu0 %1097, %v1056
        %v1099 = vpop.permute.xlu0 %1098
        %1102 = vset.pattern.permute.xlu0 0
        %1103 = vperm.xlu0 %1102, %v1057
        %v1104 = vpop.permute.xlu0 %1103
        %1107 = vset.pattern.permute.xlu0 0
        %1108 = vperm.xlu0 %1107, %v1058
        %v1109 = vpop.permute.xlu0 %1108
        %1112 = vset.pattern.permute.xlu0 0
        %1113 = vperm.xlu0 %1112, %v1059
        %v1114 = vpop.permute.xlu0 %1113
        %1117 = vset.pattern.permute.xlu0 0
        %1118 = vperm.xlu0 %1117, %v1060
        %v1119 = vpop.permute.xlu0 %1118
        %1122 = vset.pattern.permute.xlu0 0
        %1123 = vperm.xlu0 %1122, %v1061
        %v1124 = vpop.permute.xlu0 %1123
        %1127 = vset.pattern.permute.xlu0 0
        %1128 = vperm.xlu0 %1127, %v1062
        %v1129 = vpop.permute.xlu0 %1128
        %1132 = vset.pattern.permute.xlu0 0
        %1133 = vperm.xlu0 %1132, %v1063
        %v1134 = vpop.permute.xlu0 %1133
        %1137 = vset.pattern.permute.xlu0 0
        %1138 = vperm.xlu0 %1137, %v1064
        %v1139 = vpop.permute.xlu0 %1138
        %1142 = vset.pattern.permute.xlu0 0
        %1143 = vperm.xlu0 %1142, %v1065
        %v1144 = vpop.permute.xlu0 %1143
        %v1146 = vadd.f32 %v1003, %v1069
        %v1147 = vadd.f32 %v1006, %v1074
        %v1148 = vadd.f32 %v1009, %v1079
        %v1149 = vadd.f32 %v1012, %v1084
        %v1150 = vadd.f32 %v1015, %v1089
        %v1151 = vadd.f32 %v1018, %v1094
        %v1152 = vadd.f32 %v1021, %v1099
        %v1153 = vadd.f32 %v1024, %v1104
        %v1154 = vadd.f32 %v1027, %v1109
        %v1155 = vadd.f32 %v1030, %v1114
        %v1156 = vadd.f32 %v1033, %v1119
        %v1157 = vadd.f32 %v1036, %v1124
        %v1158 = vadd.f32 %v1039, %v1129
        %v1159 = vadd.f32 %v1042, %v1134
        %v1160 = vadd.f32 %v1045, %v1139
        %v1161 = vadd.f32 %v1048, %v1144
        %v1162 = vld [vmem:[%s9] sm:$0xff]
        %v1163 = vld [vmem:[%s9 + $0x8] sm:$0xff]
        %v1164 = vld [vmem:[%s9 + $0x10] sm:$0xff]
        %v1165 = vld [vmem:[%s9 + $0x18] sm:$0xff]
        %v1166 = vld [vmem:[%s9 + $0x20] sm:$0xff]
        %v1167 = vld [vmem:[%s9 + $0x28] sm:$0xff]
        %v1168 = vld [vmem:[%s9 + $0x30] sm:$0xff]
        %v1169 = vld [vmem:[%s9 + $0x38] sm:$0xff]
        %v1170 = vld [vmem:[%s9 + $0x40] sm:$0xff]
        %v1171 = vld [vmem:[%s9 + $0x48] sm:$0xff]
        %v1172 = vld [vmem:[%s9 + $0x50] sm:$0xff]
        %v1173 = vld [vmem:[%s9 + $0x58] sm:$0xff]
        %v1174 = vld [vmem:[%s9 + $0x60] sm:$0xff]
        %v1175 = vld [vmem:[%s9 + $0x68] sm:$0xff]
        %v1176 = vld [vmem:[%s9 + $0x70] sm:$0xff]
        %v1177 = vld [vmem:[%s9 + $0x78] sm:$0xff]
        %1178 = vmatpush.msra.mxu0 %v1161
        %1179 = vmatpush.msra.mxu0 %v1160
        %1180 = vmatpush.msra.mxu0 %v1159
        %1181 = vmatpush.msra.mxu0 %v1158
        %1182 = vmatpush.msra.mxu0 %v1157
        %1183 = vmatpush.msra.mxu0 %v1156
        %1184 = vmatpush.msra.mxu0 %v1155
        %1185 = vmatpush.msra.mxu0 %v1154
        %1186 = vmatpush.msra.mxu0 %v1153
        %1187 = vmatpush.msra.mxu0 %v1152
        %1188 = vmatpush.msra.mxu0 %v1151
        %1189 = vmatpush.msra.mxu0 %v1150
        %1190 = vmatpush.msra.mxu0 %v1149
        %1191 = vmatpush.msra.mxu0 %v1148
        %1192 = vmatpush.msra.mxu0 %v1147
        %1193 = vmatpush.msra.mxu0 %v1146
        %1194 = vmatmul.f32.gmra.mxu0 %v1162
        %v1195 = vpop.f32.mrf.mxu0
        %v1196 = vadd.f32 0.0, %v1195
        %1197 = vmatmul.f32.gmra.mxu0 %v1163
        %v1198 = vpop.f32.mrf.mxu0
        %v1199 = vadd.f32 0.0, %v1198
        %1200 = vmatmul.f32.gmra.mxu0 %v1164
        %v1201 = vpop.f32.mrf.mxu0
        %v1202 = vadd.f32 0.0, %v1201
        %1203 = vmatmul.f32.gmra.mxu0 %v1165
        %v1204 = vpop.f32.mrf.mxu0
        %v1205 = vadd.f32 0.0, %v1204
        %1206 = vmatmul.f32.gmra.mxu0 %v1166
        %v1207 = vpop.f32.mrf.mxu0
        %v1208 = vadd.f32 0.0, %v1207
        %1209 = vmatmul.f32.gmra.mxu0 %v1167
        %v1210 = vpop.f32.mrf.mxu0
        %v1211 = vadd.f32 0.0, %v1210
        %1212 = vmatmul.f32.gmra.mxu0 %v1168
        %v1213 = vpop.f32.mrf.mxu0
        %v1214 = vadd.f32 0.0, %v1213
        %1215 = vmatmul.f32.gmra.mxu0 %v1169
        %v1216 = vpop.f32.mrf.mxu0
        %v1217 = vadd.f32 0.0, %v1216
        %1218 = vmatmul.f32.gmra.mxu0 %v1170
        %v1219 = vpop.f32.mrf.mxu0
        %v1220 = vadd.f32 0.0, %v1219
        %1221 = vmatmul.f32.gmra.mxu0 %v1171
        %v1222 = vpop.f32.mrf.mxu0
        %v1223 = vadd.f32 0.0, %v1222
        %1224 = vmatmul.f32.gmra.mxu0 %v1172
        %v1225 = vpop.f32.mrf.mxu0
        %v1226 = vadd.f32 0.0, %v1225
        %1227 = vmatmul.f32.gmra.mxu0 %v1173
        %v1228 = vpop.f32.mrf.mxu0
        %v1229 = vadd.f32 0.0, %v1228
        %1230 = vmatmul.f32.gmra.mxu0 %v1174
        %v1231 = vpop.f32.mrf.mxu0
        %v1232 = vadd.f32 0.0, %v1231
        %1233 = vmatmul.f32.gmra.mxu0 %v1175
        %v1234 = vpop.f32.mrf.mxu0
        %v1235 = vadd.f32 0.0, %v1234
        %1236 = vmatmul.f32.gmra.mxu0 %v1176
        %v1237 = vpop.f32.mrf.mxu0
        %v1238 = vadd.f32 0.0, %v1237
        %1239 = vmatmul.f32.gmra.mxu0 %v1177
        %v1240 = vpop.f32.mrf.mxu0
        %v1241 = vadd.f32 0.0, %v1240
        %1242 = vdwg.mxu0
        %v1243 = vld [vmem:[%s12] sm:$0xff]
        %v1244 = vld [vmem:[%s12 + $0x8] sm:$0xff]
        %v1245 = vld [vmem:[%s12 + $0x10] sm:$0xff]
        %v1246 = vld [vmem:[%s12 + $0x18] sm:$0xff]
        %v1247 = vld [vmem:[%s12 + $0x20] sm:$0xff]
        %v1248 = vld [vmem:[%s12 + $0x28] sm:$0xff]
        %v1249 = vld [vmem:[%s12 + $0x30] sm:$0xff]
        %v1250 = vld [vmem:[%s12 + $0x38] sm:$0xff]
        %v1251 = vld [vmem:[%s10] sm:$0xff]
        %v1252 = vld [vmem:[%s10 + $0x8] sm:$0xff]
        %v1253 = vld [vmem:[%s10 + $0x10] sm:$0xff]
        %v1254 = vld [vmem:[%s10 + $0x18] sm:$0xff]
        %vm1255 = vcmask 261120
        %v1257 = vsel %vm1255, %v1196, 0
        %v1260 = vsel %vm1255, %v1199, 0
        %v1263 = vsel %vm1255, %v1202, 0
        %v1266 = vsel %vm1255, %v1205, 0
        %v1269 = vsel %vm1255, %v1208, 0
        %v1272 = vsel %vm1255, %v1211, 0
        %v1275 = vsel %vm1255, %v1214, 0
        %v1278 = vsel %vm1255, %v1217, 0
        %v1281 = vsel %vm1255, %v1220, 0
        %v1284 = vsel %vm1255, %v1223, 0
        %v1287 = vsel %vm1255, %v1226, 0
        %v1290 = vsel %vm1255, %v1229, 0
        %v1293 = vsel %vm1255, %v1232, 0
        %v1296 = vsel %vm1255, %v1235, 0
        %v1299 = vsel %vm1255, %v1238, 0
        %v1302 = vsel %vm1255, %v1241, 0
        %1304 = vmatpush.msra.mxu0 0.0
        %1305 = vmatpush.msra.mxu0 0.0
        %1306 = vmatpush.msra.mxu0 0.0
        %1307 = vmatpush.msra.mxu0 0.0
        %1308 = vmatpush.msra.mxu0 0.0
        %1309 = vmatpush.msra.mxu0 0.0
        %1310 = vmatpush.msra.mxu0 0.0
        %1311 = vmatpush.msra.mxu0 0.0
        %1312 = vmatpush.msra.mxu0 0.0
        %1313 = vmatpush.msra.mxu0 0.0
        %1314 = vmatpush.msra.mxu0 0.0
        %1315 = vmatpush.msra.mxu0 0.0
        %1316 = vmatpush.msra.mxu0 %v1254
        %1317 = vmatpush.msra.mxu0 %v1253
        %1318 = vmatpush.msra.mxu0 %v1252
        %1319 = vmatpush.msra.mxu0 %v1251
        %1320 = vmatmul.f32.gmra.mxu0 %v1257
        %v1321 = vpop.f32.mrf.mxu0
        %v1322 = vadd.f32 0.0, %v1321
        %1323 = vmatmul.f32.gmra.mxu0 %v1260
        %v1324 = vpop.f32.mrf.mxu0
        %v1325 = vadd.f32 0.0, %v1324
        %1326 = vmatmul.f32.gmra.mxu0 %v1263
        %v1327 = vpop.f32.mrf.mxu0
        %v1328 = vadd.f32 0.0, %v1327
        %1329 = vmatmul.f32.gmra.mxu0 %v1266
        %v1330 = vpop.f32.mrf.mxu0
        %v1331 = vadd.f32 0.0, %v1330
        %1332 = vmatmul.f32.gmra.mxu0 %v1269
        %v1333 = vpop.f32.mrf.mxu0
        %v1334 = vadd.f32 0.0, %v1333
        %1335 = vmatmul.f32.gmra.mxu0 %v1272
        %v1336 = vpop.f32.mrf.mxu0
        %v1337 = vadd.f32 0.0, %v1336
        %1338 = vmatmul.f32.gmra.mxu0 %v1275
        %v1339 = vpop.f32.mrf.mxu0
        %v1340 = vadd.f32 0.0, %v1339
        %1341 = vmatmul.f32.gmra.mxu0 %v1278
        %v1342 = vpop.f32.mrf.mxu0
        %v1343 = vadd.f32 0.0, %v1342
        %1344 = vmatmul.f32.gmra.mxu0 %v1281
        %v1345 = vpop.f32.mrf.mxu0
        %v1346 = vadd.f32 0.0, %v1345
        %1347 = vmatmul.f32.gmra.mxu0 %v1284
        %v1348 = vpop.f32.mrf.mxu0
        %v1349 = vadd.f32 0.0, %v1348
        %1350 = vmatmul.f32.gmra.mxu0 %v1287
        %v1351 = vpop.f32.mrf.mxu0
        %v1352 = vadd.f32 0.0, %v1351
        %1353 = vmatmul.f32.gmra.mxu0 %v1290
        %v1354 = vpop.f32.mrf.mxu0
        %v1355 = vadd.f32 0.0, %v1354
        %1356 = vmatmul.f32.gmra.mxu0 %v1293
        %v1357 = vpop.f32.mrf.mxu0
        %v1358 = vadd.f32 0.0, %v1357
        %1359 = vmatmul.f32.gmra.mxu0 %v1296
        %v1360 = vpop.f32.mrf.mxu0
        %v1361 = vadd.f32 0.0, %v1360
        %1362 = vmatmul.f32.gmra.mxu0 %v1299
        %v1363 = vpop.f32.mrf.mxu0
        %v1364 = vadd.f32 0.0, %v1363
        %1365 = vmatmul.f32.gmra.mxu0 %v1302
        %v1366 = vpop.f32.mrf.mxu0
        %v1367 = vadd.f32 0.0, %v1366
        %1368 = vdwg.mxu0
        %v1369 = vld [vmem:[%s13] sm:$0xff]
        %v1370 = vld [vmem:[%s13 + $0x8] sm:$0xff]
        %v1371 = vld [vmem:[%s13 + $0x10] sm:$0xff]
        %v1372 = vld [vmem:[%s13 + $0x18] sm:$0xff]
        %v1373 = vld [vmem:[%s13 + $0x20] sm:$0xff]
        %v1374 = vld [vmem:[%s13 + $0x28] sm:$0xff]
        %v1375 = vld [vmem:[%s13 + $0x30] sm:$0xff]
        %v1376 = vld [vmem:[%s13 + $0x38] sm:$0xff]
        %v1377 = vld [vmem:[%s11] sm:$0xff]
        %v1378 = vld [vmem:[%s11 + $0x8] sm:$0xff]
        %v1379 = vld [vmem:[%s11 + $0x10] sm:$0xff]
        %v1380 = vld [vmem:[%s11 + $0x18] sm:$0xff]
        %1381 = vmatpush.msra.mxu0 0.0
        %1382 = vmatpush.msra.mxu0 0.0
        %1383 = vmatpush.msra.mxu0 0.0
        %1384 = vmatpush.msra.mxu0 0.0
        %1385 = vmatpush.msra.mxu0 0.0
        %1386 = vmatpush.msra.mxu0 0.0
        %1387 = vmatpush.msra.mxu0 0.0
        %1388 = vmatpush.msra.mxu0 0.0
        %1389 = vmatpush.msra.mxu0 0.0
        %1390 = vmatpush.msra.mxu0 0.0
        %1391 = vmatpush.msra.mxu0 0.0
        %1392 = vmatpush.msra.mxu0 0.0
        %1393 = vmatpush.msra.mxu0 %v1380
        %1394 = vmatpush.msra.mxu0 %v1379
        %1395 = vmatpush.msra.mxu0 %v1378
        %1396 = vmatpush.msra.mxu0 %v1377
        %1397 = vmatmul.f32.gmra.mxu0 %v1257
        %v1398 = vpop.f32.mrf.mxu0
        %v1399 = vadd.f32 0.0, %v1398
        %1400 = vmatmul.f32.gmra.mxu0 %v1260
        %v1401 = vpop.f32.mrf.mxu0
        %v1402 = vadd.f32 0.0, %v1401
        %1403 = vmatmul.f32.gmra.mxu0 %v1263
        %v1404 = vpop.f32.mrf.mxu0
        %v1405 = vadd.f32 0.0, %v1404
        %1406 = vmatmul.f32.gmra.mxu0 %v1266
        %v1407 = vpop.f32.mrf.mxu0
        %v1408 = vadd.f32 0.0, %v1407
        %1409 = vmatmul.f32.gmra.mxu0 %v1269
        %v1410 = vpop.f32.mrf.mxu0
        %v1411 = vadd.f32 0.0, %v1410
        %1412 = vmatmul.f32.gmra.mxu0 %v1272
        %v1413 = vpop.f32.mrf.mxu0
        %v1414 = vadd.f32 0.0, %v1413
        %1415 = vmatmul.f32.gmra.mxu0 %v1275
        %v1416 = vpop.f32.mrf.mxu0
        %v1417 = vadd.f32 0.0, %v1416
        %1418 = vmatmul.f32.gmra.mxu0 %v1278
        %v1419 = vpop.f32.mrf.mxu0
        %v1420 = vadd.f32 0.0, %v1419
        %1421 = vmatmul.f32.gmra.mxu0 %v1281
        %v1422 = vpop.f32.mrf.mxu0
        %v1423 = vadd.f32 0.0, %v1422
        %1424 = vmatmul.f32.gmra.mxu0 %v1284
        %v1425 = vpop.f32.mrf.mxu0
        %v1426 = vadd.f32 0.0, %v1425
        %1427 = vmatmul.f32.gmra.mxu0 %v1287
        %v1428 = vpop.f32.mrf.mxu0
        %v1429 = vadd.f32 0.0, %v1428
        %1430 = vmatmul.f32.gmra.mxu0 %v1290
        %v1431 = vpop.f32.mrf.mxu0
        %v1432 = vadd.f32 0.0, %v1431
        %1433 = vmatmul.f32.gmra.mxu0 %v1293
        %v1434 = vpop.f32.mrf.mxu0
        %v1435 = vadd.f32 0.0, %v1434
        %1436 = vmatmul.f32.gmra.mxu0 %v1296
        %v1437 = vpop.f32.mrf.mxu0
        %v1438 = vadd.f32 0.0, %v1437
        %1439 = vmatmul.f32.gmra.mxu0 %v1299
        %v1440 = vpop.f32.mrf.mxu0
        %v1441 = vadd.f32 0.0, %v1440
        %1442 = vmatmul.f32.gmra.mxu0 %v1302
        %v1443 = vpop.f32.mrf.mxu0
        %v1444 = vadd.f32 0.0, %v1443
        %1445 = vdwg.mxu0
        %1446 = vmatpush.msra.mxu0 %v1444
        %1447 = vmatpush.msra.mxu0 %v1441
        %1448 = vmatpush.msra.mxu0 %v1438
        %1449 = vmatpush.msra.mxu0 %v1435
        %1450 = vmatpush.msra.mxu0 %v1432
        %1451 = vmatpush.msra.mxu0 %v1429
        %1452 = vmatpush.msra.mxu0 %v1426
        %1453 = vmatpush.msra.mxu0 %v1423
        %1454 = vmatpush.msra.mxu0 %v1420
        %1455 = vmatpush.msra.mxu0 %v1417
        %1456 = vmatpush.msra.mxu0 %v1414
        %1457 = vmatpush.msra.mxu0 %v1411
        %1458 = vmatpush.msra.mxu0 %v1408
        %1459 = vmatpush.msra.mxu0 %v1405
        %1460 = vmatpush.msra.mxu0 %v1402
        %1461 = vmatpush.msra.mxu0 %v1399
        %1462 = vmatmul.f32.gmra.mxu0 %v1369
        %v1463 = vpop.f32.mrf.mxu0
        %v1464 = vadd.f32 0.0, %v1463
        %1465 = vmatmul.f32.gmra.mxu0 %v1370
        %v1466 = vpop.f32.mrf.mxu0
        %v1467 = vadd.f32 0.0, %v1466
        %1468 = vmatmul.f32.gmra.mxu0 %v1371
        %v1469 = vpop.f32.mrf.mxu0
        %v1470 = vadd.f32 0.0, %v1469
        %1471 = vmatmul.f32.gmra.mxu0 %v1372
        %v1472 = vpop.f32.mrf.mxu0
        %v1473 = vadd.f32 0.0, %v1472
        %1474 = vmatmul.f32.gmra.mxu0 %v1373
        %v1475 = vpop.f32.mrf.mxu0
        %v1476 = vadd.f32 0.0, %v1475
        %1477 = vmatmul.f32.gmra.mxu0 %v1374
        %v1478 = vpop.f32.mrf.mxu0
        %v1479 = vadd.f32 0.0, %v1478
        %1480 = vmatmul.f32.gmra.mxu0 %v1375
        %v1481 = vpop.f32.mrf.mxu0
        %v1482 = vadd.f32 0.0, %v1481
        %1483 = vmatmul.f32.gmra.mxu0 %v1376
        %v1484 = vpop.f32.mrf.mxu0
        %v1485 = vadd.f32 0.0, %v1484
        %1486 = vdwg.mxu0
        %1487 = vmatpush.msra.mxu0 %v1367
        %1488 = vmatpush.msra.mxu0 %v1364
        %1489 = vmatpush.msra.mxu0 %v1361
        %1490 = vmatpush.msra.mxu0 %v1358
        %1491 = vmatpush.msra.mxu0 %v1355
        %1492 = vmatpush.msra.mxu0 %v1352
        %1493 = vmatpush.msra.mxu0 %v1349
        %1494 = vmatpush.msra.mxu0 %v1346
        %1495 = vmatpush.msra.mxu0 %v1343
        %1496 = vmatpush.msra.mxu0 %v1340
        %1497 = vmatpush.msra.mxu0 %v1337
        %1498 = vmatpush.msra.mxu0 %v1334
        %1499 = vmatpush.msra.mxu0 %v1331
        %1500 = vmatpush.msra.mxu0 %v1328
        %1501 = vmatpush.msra.mxu0 %v1325
        %1502 = vmatpush.msra.mxu0 %v1322
        %1503 = vmatmul.f32.gmra.mxu0 %v1243
        %v1504 = vpop.f32.mrf.mxu0
        %v1505 = vadd.f32 %v1464, %v1504
        %1506 = vmatmul.f32.gmra.mxu0 %v1244
        %v1507 = vpop.f32.mrf.mxu0
        %v1508 = vadd.f32 %v1467, %v1507
        %1509 = vmatmul.f32.gmra.mxu0 %v1245
        %v1510 = vpop.f32.mrf.mxu0
        %v1511 = vadd.f32 %v1470, %v1510
        %1512 = vmatmul.f32.gmra.mxu0 %v1246
        %v1513 = vpop.f32.mrf.mxu0
        %v1514 = vadd.f32 %v1473, %v1513
        %1515 = vmatmul.f32.gmra.mxu0 %v1247
        %v1516 = vpop.f32.mrf.mxu0
        %v1517 = vadd.f32 %v1476, %v1516
        %1518 = vmatmul.f32.gmra.mxu0 %v1248
        %v1519 = vpop.f32.mrf.mxu0
        %v1520 = vadd.f32 %v1479, %v1519
        %1521 = vmatmul.f32.gmra.mxu0 %v1249
        %v1522 = vpop.f32.mrf.mxu0
        %v1523 = vadd.f32 %v1482, %v1522
        %1524 = vmatmul.f32.gmra.mxu0 %v1250
        %v1525 = vpop.f32.mrf.mxu0
        %v1526 = vadd.f32 %v1485, %v1525
        %1527 = vdwg.mxu0
        %v1528 = vld [vmem:[%s14] sm:$0xff]
        %v1529 = vld [vmem:[%s14 + $0x8] sm:$0xff]
        %v1530 = vld [vmem:[%s14 + $0x10] sm:$0xff]
        %v1531 = vld [vmem:[%s14 + $0x18] sm:$0xff]
        %v1532 = vld [vmem:[%s14 + $0x20] sm:$0xff]
        %v1533 = vld [vmem:[%s14 + $0x28] sm:$0xff]
        %v1534 = vld [vmem:[%s14 + $0x30] sm:$0xff]
        %v1535 = vld [vmem:[%s14 + $0x38] sm:$0xff]
        %1537 = vset.pattern.permute.xlu0 0
        %1538 = vperm.xlu0 %1537, %v1528
        %v1539 = vpop.permute.xlu0 %1538
        %1542 = vset.pattern.permute.xlu0 0
        %1543 = vperm.xlu0 %1542, %v1529
        %v1544 = vpop.permute.xlu0 %1543
        %1547 = vset.pattern.permute.xlu0 0
        %1548 = vperm.xlu0 %1547, %v1530
        %v1549 = vpop.permute.xlu0 %1548
        %1552 = vset.pattern.permute.xlu0 0
        %1553 = vperm.xlu0 %1552, %v1531
        %v1554 = vpop.permute.xlu0 %1553
        %1557 = vset.pattern.permute.xlu0 0
        %1558 = vperm.xlu0 %1557, %v1532
        %v1559 = vpop.permute.xlu0 %1558
        %1562 = vset.pattern.permute.xlu0 0
        %1563 = vperm.xlu0 %1562, %v1533
        %v1564 = vpop.permute.xlu0 %1563
        %1567 = vset.pattern.permute.xlu0 0
        %1568 = vperm.xlu0 %1567, %v1534
        %v1569 = vpop.permute.xlu0 %1568
        %1572 = vset.pattern.permute.xlu0 0
        %1573 = vperm.xlu0 %1572, %v1535
        %v1574 = vpop.permute.xlu0 %1573
        %v1576 = vadd.f32 %v1505, %v1539
        %v1577 = vadd.f32 %v1508, %v1544
        %v1578 = vadd.f32 %v1511, %v1549
        %v1579 = vadd.f32 %v1514, %v1554
        %v1580 = vadd.f32 %v1517, %v1559
        %v1581 = vadd.f32 %v1520, %v1564
        %v1582 = vadd.f32 %v1523, %v1569
        %v1583 = vadd.f32 %v1526, %v1574
        %1584 = vmatpush.msra.mxu0 0.0
        %1585 = vmatpush.msra.mxu0 0.0
        %1586 = vmatpush.msra.mxu0 0.0
        %1587 = vmatpush.msra.mxu0 0.0
        %1588 = vmatpush.msra.mxu0 0.0
        %1589 = vmatpush.msra.mxu0 0.0
        %1590 = vmatpush.msra.mxu0 0.0
        %1591 = vmatpush.msra.mxu0 0.0
        %1592 = vmatpush.msra.mxu0 %v1583
        %1593 = vmatpush.msra.mxu0 %v1582
        %1594 = vmatpush.msra.mxu0 %v1581
        %1595 = vmatpush.msra.mxu0 %v1580
        %1596 = vmatpush.msra.mxu0 %v1579
        %1597 = vmatpush.msra.mxu0 %v1578
        %1598 = vmatpush.msra.mxu0 %v1577
        %1599 = vmatpush.msra.mxu0 %v1576
        %1600 = vmatmul.f32.gmra.mxu0 %v660
        %v1601 = vpop.f32.mrf.mxu0
        %v1602 = vadd.f32 0.0, %v1601
        %1603 = vmatmul.f32.gmra.mxu0 %v663
        %v1604 = vpop.f32.mrf.mxu0
        %v1605 = vadd.f32 0.0, %v1604
        %1606 = vmatmul.f32.gmra.mxu0 %v666
        %v1607 = vpop.f32.mrf.mxu0
        %v1608 = vadd.f32 0.0, %v1607
        %1609 = vmatmul.f32.gmra.mxu0 %v669
        %v1610 = vpop.f32.mrf.mxu0
        %v1611 = vadd.f32 0.0, %v1610
        %1612 = vmatmul.f32.gmra.mxu0 %v672
        %v1613 = vpop.f32.mrf.mxu0
        %v1614 = vadd.f32 0.0, %v1613
        %1615 = vmatmul.f32.gmra.mxu0 %v675
        %v1616 = vpop.f32.mrf.mxu0
        %v1617 = vadd.f32 0.0, %v1616
        %1618 = vmatmul.f32.gmra.mxu0 %v678
        %v1619 = vpop.f32.mrf.mxu0
        %v1620 = vadd.f32 0.0, %v1619
        %1621 = vmatmul.f32.gmra.mxu0 %v681
        %v1622 = vpop.f32.mrf.mxu0
        %v1623 = vadd.f32 0.0, %v1622
        %1624 = vmatmul.f32.gmra.mxu0 %v684
        %v1625 = vpop.f32.mrf.mxu0
        %v1626 = vadd.f32 0.0, %v1625
        %1627 = vmatmul.f32.gmra.mxu0 %v687
        %v1628 = vpop.f32.mrf.mxu0
        %v1629 = vadd.f32 0.0, %v1628
        %1630 = vmatmul.f32.gmra.mxu0 %v690
        %v1631 = vpop.f32.mrf.mxu0
        %v1632 = vadd.f32 0.0, %v1631
        %1633 = vmatmul.f32.gmra.mxu0 %v693
        %v1634 = vpop.f32.mrf.mxu0
        %v1635 = vadd.f32 0.0, %v1634
        %1636 = vmatmul.f32.gmra.mxu0 %v696
        %v1637 = vpop.f32.mrf.mxu0
        %v1638 = vadd.f32 0.0, %v1637
        %1639 = vmatmul.f32.gmra.mxu0 %v699
        %v1640 = vpop.f32.mrf.mxu0
        %v1641 = vadd.f32 0.0, %v1640
        %1642 = vmatmul.f32.gmra.mxu0 %v702
        %v1643 = vpop.f32.mrf.mxu0
        %v1644 = vadd.f32 0.0, %v1643
        %1645 = vmatmul.f32.gmra.mxu0 %v705
        %v1646 = vpop.f32.mrf.mxu0
        %v1647 = vadd.f32 0.0, %v1646
        %1648 = vdwg.mxu0
        %v1650 = vsel %vm774, %v1602, 0
        %v1653 = vsel %vm774, %v1605, 0
        %v1656 = vsel %vm774, %v1608, 0
        %v1659 = vsel %vm774, %v1611, 0
        %v1662 = vsel %vm774, %v1614, 0
        %v1665 = vsel %vm774, %v1617, 0
        %v1668 = vsel %vm774, %v1620, 0
        %v1671 = vsel %vm774, %v1623, 0
        %v1674 = vsel %vm774, %v1626, 0
        %v1677 = vsel %vm774, %v1629, 0
        %v1680 = vsel %vm774, %v1632, 0
        %v1683 = vsel %vm774, %v1635, 0
        %v1686 = vsel %vm774, %v1638, 0
        %v1689 = vsel %vm774, %v1641, 0
        %v1692 = vsel %vm774, %v1644, 0
        %v1695 = vsel %vm774, %v1647, 0
        %1697 = vmatpush.msra.mxu0 0.0
        %1698 = vmatpush.msra.mxu0 0.0
        %1699 = vmatpush.msra.mxu0 0.0
        %1700 = vmatpush.msra.mxu0 0.0
        %1701 = vmatpush.msra.mxu0 0.0
        %1702 = vmatpush.msra.mxu0 0.0
        %1703 = vmatpush.msra.mxu0 0.0
        %1704 = vmatpush.msra.mxu0 0.0
        %1705 = vmatpush.msra.mxu0 0.0
        %1706 = vmatpush.msra.mxu0 0.0
        %1707 = vmatpush.msra.mxu0 0.0
        %1708 = vmatpush.msra.mxu0 0.0
        %1709 = vmatpush.msra.mxu0 0.0
        %1710 = vmatpush.msra.mxu0 0.0
        %1711 = vmatpush.msra.mxu0 %v773
        %1712 = vmatpush.msra.mxu0 %v772
        %1713 = vmatmul.f32.gmra.mxu0 %v1650
        %v1714 = vpop.f32.mrf.mxu0
        %v1715 = vadd.f32 0.0, %v1714
        %1716 = vmatmul.f32.gmra.mxu0 %v1653
        %v1717 = vpop.f32.mrf.mxu0
        %v1718 = vadd.f32 0.0, %v1717
        %1719 = vmatmul.f32.gmra.mxu0 %v1656
        %v1720 = vpop.f32.mrf.mxu0
        %v1721 = vadd.f32 0.0, %v1720
        %1722 = vmatmul.f32.gmra.mxu0 %v1659
        %v1723 = vpop.f32.mrf.mxu0
        %v1724 = vadd.f32 0.0, %v1723
        %1725 = vmatmul.f32.gmra.mxu0 %v1662
        %v1726 = vpop.f32.mrf.mxu0
        %v1727 = vadd.f32 0.0, %v1726
        %1728 = vmatmul.f32.gmra.mxu0 %v1665
        %v1729 = vpop.f32.mrf.mxu0
        %v1730 = vadd.f32 0.0, %v1729
        %1731 = vmatmul.f32.gmra.mxu0 %v1668
        %v1732 = vpop.f32.mrf.mxu0
        %v1733 = vadd.f32 0.0, %v1732
        %1734 = vmatmul.f32.gmra.mxu0 %v1671
        %v1735 = vpop.f32.mrf.mxu0
        %v1736 = vadd.f32 0.0, %v1735
        %1737 = vmatmul.f32.gmra.mxu0 %v1674
        %v1738 = vpop.f32.mrf.mxu0
        %v1739 = vadd.f32 0.0, %v1738
        %1740 = vmatmul.f32.gmra.mxu0 %v1677
        %v1741 = vpop.f32.mrf.mxu0
        %v1742 = vadd.f32 0.0, %v1741
        %1743 = vmatmul.f32.gmra.mxu0 %v1680
        %v1744 = vpop.f32.mrf.mxu0
        %v1745 = vadd.f32 0.0, %v1744
        %1746 = vmatmul.f32.gmra.mxu0 %v1683
        %v1747 = vpop.f32.mrf.mxu0
        %v1748 = vadd.f32 0.0, %v1747
        %1749 = vmatmul.f32.gmra.mxu0 %v1686
        %v1750 = vpop.f32.mrf.mxu0
        %v1751 = vadd.f32 0.0, %v1750
        %1752 = vmatmul.f32.gmra.mxu0 %v1689
        %v1753 = vpop.f32.mrf.mxu0
        %v1754 = vadd.f32 0.0, %v1753
        %1755 = vmatmul.f32.gmra.mxu0 %v1692
        %v1756 = vpop.f32.mrf.mxu0
        %v1757 = vadd.f32 0.0, %v1756
        %1758 = vmatmul.f32.gmra.mxu0 %v1695
        %v1759 = vpop.f32.mrf.mxu0
        %v1760 = vadd.f32 0.0, %v1759
        %1761 = vdwg.mxu0
        %v1762 = vmax.f32 %v1715, 0.0
        %v1763 = vmax.f32 %v1718, 0.0
        %v1764 = vmax.f32 %v1721, 0.0
        %v1765 = vmax.f32 %v1724, 0.0
        %v1766 = vmax.f32 %v1727, 0.0
        %v1767 = vmax.f32 %v1730, 0.0
        %v1768 = vmax.f32 %v1733, 0.0
        %v1769 = vmax.f32 %v1736, 0.0
        %v1770 = vmax.f32 %v1739, 0.0
        %v1771 = vmax.f32 %v1742, 0.0
        %v1772 = vmax.f32 %v1745, 0.0
        %v1773 = vmax.f32 %v1748, 0.0
        %v1774 = vmax.f32 %v1751, 0.0
        %v1775 = vmax.f32 %v1754, 0.0
        %v1776 = vmax.f32 %v1757, 0.0
        %v1777 = vmax.f32 %v1760, 0.0
        %v1778 = vadd.f32 %v1762, %v529
        %v1779 = vadd.f32 %v1763, %v530
        %v1780 = vadd.f32 %v1764, %v531
        %v1781 = vadd.f32 %v1765, %v532
        %v1782 = vadd.f32 %v1766, %v533
        %v1783 = vadd.f32 %v1767, %v534
        %v1784 = vadd.f32 %v1768, %v535
        %v1785 = vadd.f32 %v1769, %v536
        %v1786 = vadd.f32 %v1770, %v537
        %v1787 = vadd.f32 %v1771, %v538
        %v1788 = vadd.f32 %v1772, %v539
        %v1789 = vadd.f32 %v1773, %v540
        %v1790 = vadd.f32 %v1774, %v541
        %v1791 = vadd.f32 %v1775, %v542
        %v1792 = vadd.f32 %v1776, %v543
        %v1793 = vadd.f32 %v1777, %v544
        %1794 = vst.msk [vmem:[%s502] sm:$0xff] %vm1255, %v1778
        %1795 = vst.msk [vmem:[%s502 + $0x8] sm:$0xff] %vm1255, %v1779
        %1796 = vst.msk [vmem:[%s502 + $0x10] sm:$0xff] %vm1255, %v1780
        %1797 = vst.msk [vmem:[%s502 + $0x18] sm:$0xff] %vm1255, %v1781
        %1798 = vst.msk [vmem:[%s502 + $0x20] sm:$0xff] %vm1255, %v1782
        %1799 = vst.msk [vmem:[%s502 + $0x28] sm:$0xff] %vm1255, %v1783
        %1800 = vst.msk [vmem:[%s502 + $0x30] sm:$0xff] %vm1255, %v1784
        %1801 = vst.msk [vmem:[%s502 + $0x38] sm:$0xff] %vm1255, %v1785
        %1802 = vst.msk [vmem:[%s502 + $0x40] sm:$0xff] %vm1255, %v1786
        %1803 = vst.msk [vmem:[%s502 + $0x48] sm:$0xff] %vm1255, %v1787
        %1804 = vst.msk [vmem:[%s502 + $0x50] sm:$0xff] %vm1255, %v1788
        %1805 = vst.msk [vmem:[%s502 + $0x58] sm:$0xff] %vm1255, %v1789
        %1806 = vst.msk [vmem:[%s502 + $0x60] sm:$0xff] %vm1255, %v1790
        %1807 = vst.msk [vmem:[%s502 + $0x68] sm:$0xff] %vm1255, %v1791
        %1808 = vst.msk [vmem:[%s502 + $0x70] sm:$0xff] %vm1255, %v1792
        %1809 = vst.msk [vmem:[%s502 + $0x78] sm:$0xff] %vm1255, %v1793
        %s1810 = sand.u32 %s362, 1
        %s1811 = scalar_lea.sflag [#allocation3], %s1810
        %s1812 = sand.u32 %s362, 1
        %s1813 = smul.addr %s1812, 128
        %s1814 = scalar_lea.vmem [#allocation2], %s1813
        // Predicated region
        $region81: #{skip_forward.1} parent=79 // pred_check
          %p1815 = pneg %p372
        $region82: #{skip_forward.1} parent=79 // pred_check_branch
          %1817 = sbr.rel (%p1815) target = $region84
        $region83: #{skip_forward.1} parent=79 // pred_region
          %1819 = vsyncadd %s1811, 0
          %s1820 = smul.addr %s29, 16
          %s1821 = smul.addr %s1820, 8
          %s1822 = scalar_lea.hbm %s15, %s1821
          %s1823 = sshll.u32 %s1814, 4
          %s1824 = int_to_ptr.vmem [resolvable:$true] %s1823
          %s1825 = sshll.u32 %s1822, 4
          %s1826 = int_to_ptr.hbm [resolvable:$true] %s1825
          %1831 = dma.vmem_to_hbm [thread:$0]  %s1824, 2048, %s1826, %s1811, 128, 128, 8
        $region84: #{skip_forward.1} parent=79 // pred_fallthru
          _
      $region80: #{skip_forward.1} parent=5 // pred_fallthru
        _
      %p1832 = scmp.le.s32.totalorder 2, %s24
      // Predicated region
      $region85: #{skip_forward.1} parent=5 // pred_check
        %p1833 = pneg %p1832
      $region86: #{skip_forward.1} parent=5 // pred_check_branch
        %1835 = sbr.rel (%p1833) target = $region88
      $region87: #{skip_forward.1} parent=5 // pred_region
        %s1836 = ssub.s32 %s24, 2
        // Predicated region
        $region89: #{skip_forward.1} parent=87 // pred_check
          %p1837 = pneg %p378
        $region90: #{skip_forward.1} parent=87 // pred_check_branch
          %1839 = sbr.rel (%p1837) target = $region92
        $region91: #{skip_forward.1} parent=87 // pred_region
          %s1840 = sand.u32 %s363, 1
          %s1841 = scalar_lea.sflag [#allocation3], %s1840
          %s1842 = sand.u32 %s363, 1
          %s1843 = smul.addr %s1842, 128
          %s1844 = scalar_lea.vmem [#allocation2], %s1843
          %1846 = dma.done %s1841, 2048
        $region92: #{skip_forward.1} parent=87 // pred_fallthru
          _
      $region88: #{skip_forward.1} parent=5 // pred_fallthru
        _
    $region6: #{skip_forward.1} parent=1 // loop_footer
      %s28 = sadd.s32 1, %s24
    $region7: #{skip_forward.1} parent=1 // loop_footer_branch
      %23 = sbr.rel target = $region3
    $region8: #{skip_forward.1} parent=1 // loop_exit
      _
    %1847 = vsyncpa [#allocation3], 1
    %s1848 = scalar_lea.sflag [#allocation3], 1
    %1849 = vsyncpa %s1848, 1

</llo_original>
